<compile_context>
chip_gen: v7x
topology: tpu7x:2x2x1
jax: 0.10.0
libtpu: 0.0.40
codegen_flags: <defaults>
</compile_context>

<pallas_src>
import functools
import math

import jax
import jax.numpy as jnp
from jax import lax
from jax.experimental import pallas as pl
from jax.experimental.pallas import tpu as pltpu


PAD_IDX = 0
NEG_FILL = -1e8                      # masked_fill value used by the module
LN_EPS = 1e-8                        # layer_norm eps (added to std, not var)
GELU_C = 0.0044715                   # coefficient exactly as written in the module
SQRT_2_OVER_PI = math.sqrt(2.0 / math.pi)
_HI = jax.lax.Precision.HIGHEST

# dot_general dimension_numbers for  A @ B^T  (contract dim 1 of both operands).
# Used only for the Q @ K^T score matmul where K is naturally (S, d_k).
_CT = (((1,), (1,)), ((), ()))


def _layer_norm(v, gamma, beta):
    """The module's custom layer_norm: unbiased std (N-1), eps added to std."""
    d = v.shape[-1]
    mean = jnp.mean(v, axis=-1, keepdims=True)
    cent = v - mean
    std = jnp.sqrt(jnp.sum(cent * cent, axis=-1, keepdims=True) / (d - 1))
    inv = pl.reciprocal(std + LN_EPS, approx=True)      # EUP slot, not a divide
    return gamma * (cent * inv) + beta


def _gelu(x):
    return 0.5 * x * (1.0 + jnp.tanh(SQRT_2_OVER_PI * (x + GELU_C * x * x * x)))


# -----------------------------------------------------------------------------
# Fused transformer (sub)layer kernel:
#     y   = x + layer_norm(MHA(q=x, k=kv, v=kv, key_mask))
#     out = y + layer_norm(FFN(y))
# One grid step handles one batch element with ALL heads.
# -----------------------------------------------------------------------------
def _layer_kernel(x_ref, kv_ref, kmask_ref,
                  wq_ref, bq_ref, wk_ref, bk_ref, wv_ref, bv_ref,
                  gamma_a_ref, beta_a_ref,
                  wf1_ref, bf1_ref, wf2_ref, bf2_ref,
                  gamma_f_ref, beta_f_ref,
                  o_ref, att_ref, *, n_head, d_k, scale):
    x = x_ref[...]                       # (S, D)  query / residual stream
    kv = kv_ref[...]                     # (S, D)  key-value source
    masked = kmask_ref[...] > 0.0        # (1, S)  True => masked_fill(-1e8),
                                         #          broadcasts over the query axis

    # ---- full-width QKV projections (weights pre-transposed in the wrapper) ---
    q = jnp.dot(x, wq_ref[...], preferred_element_type=jnp.float32) + bq_ref[...]
    k = jnp.dot(kv, wk_ref[...], preferred_element_type=jnp.float32) + bk_ref[...]
    v = jnp.dot(kv, wv_ref[...], preferred_element_type=jnp.float32) + bv_ref[...]
    q = q * scale                        # fold 1/sqrt(d_k) into Q once

    # ---- per-head masked attention; results written into a lane-dense slab ---
    # TODO(synk): for large S, tile over KV blocks with an online-softmax
    # accumulator (flash pattern) instead of materializing (S, S) scores.
    for h in range(n_head):              # static unroll over heads
        sl = slice(h * d_k, (h + 1) * d_k)
        q_h, k_h, v_h = q[:, sl], k[:, sl], v[:, sl]
        s_h = lax.dot_general(q_h, k_h, _CT,
                              preferred_element_type=jnp.float32)     # (S, S)
        s_h = jnp.where(masked, NEG_FILL, s_h)
        m_h = jnp.max(s_h, axis=-1, keepdims=True)
        e_h = jnp.exp(s_h - m_h)
        # softmax denominator via the EUP approximate reciprocal (free slot)
        p_h = e_h * pl.reciprocal(jnp.sum(e_h, axis=-1, keepdims=True), approx=True)
        att_ref[:, sl] = jnp.dot(p_h, v_h, preferred_element_type=jnp.float32)

    att = att_ref[...]                   # (S, D) lane-dense merged heads

    # ---- layer_connection (attention): residual + custom layer_norm ----------
    # (dropout layers are identity in this eval-mode forward)
    y = x + _layer_norm(att, gamma_a_ref[...], beta_a_ref[...])

    # ---- feed-forward network -------------------------------------------------
    hdn = jnp.dot(y, wf1_ref[...], preferred_element_type=jnp.float32) + bf1_ref[...]
    f = jnp.dot(_gelu(hdn), wf2_ref[...], preferred_element_type=jnp.float32) + bf2_ref[...]

    # ---- layer_connection (FFN) -----------------------------------------------
    o_ref[...] = (y + _layer_norm(f, gamma_f_ref[...], beta_f_ref[...])).astype(o_ref.dtype)


def transformer_layer(x, kv, kmask, attn_p, ln_a, ffn_p, ln_f, *, n_head):
    """Fused (attention + residual-LN + FFN + residual-LN) layer.

    x     : (B, S, D) residual stream / queries
    kv    : (B, S, D) key/value source (== x for self-attention)
    kmask : (B, 1, S) float, 1.0 => key position masked (filled with -1e8)
    """
    B, S, D = x.shape
    d_k = D // n_head
    d_ff = ffn_p["w1"].shape[0]

    kernel = functools.partial(_layer_kernel, n_head=n_head, d_k=d_k,
                               scale=1.0 / math.sqrt(d_k))

    row = pl.BlockSpec((None, S, D), lambda b: (b, 0, 0))
    ln_spec = pl.BlockSpec((None, S, D), lambda b: (0, 0, 0))

    def fixed(shape):
        n = len(shape)
        return pl.BlockSpec(shape, lambda b: (0,) * n)

    return pl.pallas_call(
        kernel,
        out_shape=jax.ShapeDtypeStruct((B, S, D), x.dtype),
        grid=(B,),
        in_specs=[
            row,                                               # x
            row,                                               # kv
            pl.BlockSpec((None, 1, S), lambda b: (b, 0, 0)),   # key padding mask row
            fixed((D, D)), fixed((1, D)),                      # wq^T, bq
            fixed((D, D)), fixed((1, D)),                      # wk^T, bk
            fixed((D, D)), fixed((1, D)),                      # wv^T, bv
            ln_spec, ln_spec,                                  # gamma_a, beta_a
            fixed((D, d_ff)), fixed((1, d_ff)),                # wf1^T, bf1
            fixed((d_ff, D)), fixed((1, D)),                   # wf2^T, bf2
            ln_spec, ln_spec,                                  # gamma_f, beta_f
        ],
        out_specs=row,
        scratch_shapes=[pltpu.VMEM((S, D), jnp.float32)],      # merged-heads slab
        compiler_params=pltpu.CompilerParams(
            dimension_semantics=("parallel",),                 # batch -> v7x 2 TCs
            vmem_limit_bytes=32 * 1024 * 1024),
    )(
        x, kv, kmask,
        # one-time wrapper-side transposes: every in-kernel dot contracts on
        # dim 0 of the RHS (no in-kernel weight transpose).
        attn_p["wq"].T, attn_p["bq"].reshape(1, D),
        attn_p["wk"].T, attn_p["bk"].reshape(1, D),
        attn_p["wv"].T, attn_p["bv"].reshape(1, D),
        ln_a["gamma"], ln_a["beta"],
        ffn_p["w1"].T, ffn_p["b1"].reshape(1, d_ff),
        ffn_p["w2"].T, ffn_p["b2"].reshape(1, D),
        ln_f["gamma"], ln_f["beta"],
    )


# -----------------------------------------------------------------------------
# Final vocabulary projection: tiled, lane-dense output blocks
# -----------------------------------------------------------------------------
def _out_proj_kernel(x_ref, w_ref, b_ref, o_ref):
    y = jnp.dot(x_ref[...], w_ref[...], preferred_element_type=jnp.float32)
    o_ref[...] = (y + b_ref[...]).astype(o_ref.dtype)


def output_linear(x, w, b):
    """(B, S, D) -> (B, S, V) tiled over (row-tile, vocab-tile).

    TODO(synk): for very large D add a K grid axis + f32 VMEM accumulator.
    """
    B, S, D = x.shape
    V = w.shape[0]
    M = B * S
    xm = x.reshape(M, D)
    wt = w.T                                   # one-time wrapper transpose: (D, V)

    # lane-dense output tile: tn a multiple of 128 (or the full V); tm a
    # multiple of 8 (or the full M).
    if V % 512 == 0:
        tn = 512
    elif V % 128 == 0:
        tn = 128
    else:
        tn = V
    tm = 256 if (M % 256 == 0) else M

    y = pl.pallas_call(
        _out_proj_kernel,
        out_shape=jax.ShapeDtypeStruct((M, V), x.dtype),
        grid=(M // tm, V // tn),
        in_specs=[pl.BlockSpec((tm, D), lambda i, j: (i, 0)),
                  pl.BlockSpec((D, tn), lambda i, j: (0, j)),
                  pl.BlockSpec((1, tn), lambda i, j: (0, j))],
        out_specs=pl.BlockSpec((tm, tn), lambda i, j: (i, j)),
        compiler_params=pltpu.CompilerParams(
            dimension_semantics=("parallel", "parallel"),
            vmem_limit_bytes=32 * 1024 * 1024),
    )(xm, wt, b.reshape(1, V))
    return y.reshape(B, S, V)


# -----------------------------------------------------------------------------
# Full Transformer forward (eval mode)
# -----------------------------------------------------------------------------
def transformer_forward(enc_ids, dec_ids, params, *, n_head):
    B, S = enc_ids.shape

    # O(S) key-padding mask row (the module's (B,S,S) mask is just this row
    # broadcast over the query axis -- broadcast happens in-kernel instead).
    enc_kmask = (enc_ids == PAD_IDX).astype(jnp.float32)[:, None, :]   # (B, 1, S)

    pe = params["pe"][:S][None, :, :]

    # TODO(synk): token-embedding gather + positional-embedding add stay in
    # plain JAX (tiny data-dependent gather glue); every transformer layer and
    # the final projection run in Pallas kernels.
    h = jnp.take(params["enc_tok_emb"], enc_ids, axis=0) + pe
    for lp in params["enc_layers"]:
        h = transformer_layer(h, h, enc_kmask,
                              lp["attn"], lp["ln1"], lp["ffn"], lp["ln2"],
                              n_head=n_head)
    enc_out = h

    d = jnp.take(params["dec_tok_emb"], dec_ids, axis=0) + pe
    for lp in params["dec_layers"]:
        # NOTE: the reference Transformer_Decoder_Layer computes a masked
        # self-attention block into `output1` that is never consumed (the
        # cross-attention connection reads decoder_input directly, and the FFN
        # connection re-uses layer_connection2).  That dead compute is skipped
        # here -- the returned value is the same function of the inputs.
        d = transformer_layer(d, enc_out, enc_kmask,
                              lp["cross"], lp["ln2"], lp["ffn"], lp["ln2"],
                              n_head=n_head)

    return output_linear(d, params["out_w"], params["out_b"])


# -----------------------------------------------------------------------------
# Parameter / constant construction (deterministic, nn.Linear-like shapes)
# -----------------------------------------------------------------------------
def _make_pe(max_len, d_model):
    pos = jnp.arange(max_len, dtype=jnp.float32)[:, None]
    div = (10000.0 ** (jnp.arange(d_model, dtype=jnp.float32) / d_model))[None, :]
    angle = pos / div[:, 0::2]
    pe = jnp.zeros((max_len, d_model), jnp.float32)
    pe = pe.at[:, 0::2].set(jnp.sin(angle))
    pe = pe.at[:, 1::2].set(jnp.cos(angle))
    return pe


def _init_linear(key, d_out, d_in):
    kw, kb = jax.random.split(key)
    bound = 1.0 / math.sqrt(d_in)
    w = jax.random.uniform(kw, (d_out, d_in), jnp.float32, -bound, bound)
    b = jax.random.uniform(kb, (d_out,), jnp.float32, -bound, bound)
    return w, b


def _init_attn(key, d_model):
    kq, kk, kv = jax.random.split(key, 3)
    wq, bq = _init_linear(kq, d_model, d_model)
    wk, bk = _init_linear(kk, d_model, d_model)
    wv, bv = _init_linear(kv, d_model, d_model)
    return dict(wq=wq, bq=bq, wk=wk, bk=bk, wv=wv, bv=bv)


def _init_ffn(key, d_model, d_ff):
    k1, k2 = jax.random.split(key)
    w1, b1 = _init_linear(k1, d_ff, d_model)
    w2, b2 = _init_linear(k2, d_model, d_ff)
    return dict(w1=w1, b1=b1, w2=w2, b2=b2)


def _init_ln(seq_len, d_model):
    return dict(gamma=jnp.ones((1, seq_len, d_model), jnp.float32),
                beta=jnp.zeros((1, seq_len, d_model), jnp.float32))


def init_params(key, *, seq_len, d_model, d_ff, n_vocab, n_layers, max_len):
    keys = jax.random.split(key, 3 + 2 * n_layers)
    enc_layers = []
    for i in range(n_layers):
        ka, kf = jax.random.split(keys[3 + i])
        enc_layers.append(dict(attn=_init_attn(ka, d_model),
                               ln1=_init_ln(seq_len, d_model),
                               ffn=_init_ffn(kf, d_model, d_ff),
                               ln2=_init_ln(seq_len, d_model)))
    dec_layers = []
    for i in range(n_layers):
        ka, kf = jax.random.split(keys[3 + n_layers + i])
        dec_layers.append(dict(cross=_init_attn(ka, d_model),
                               ffn=_init_ffn(kf, d_model, d_ff),
                               ln2=_init_ln(seq_len, d_model)))
    enc_emb = jax.random.normal(keys[0], (n_vocab, d_model), jnp.float32).at[PAD_IDX].set(0.0)
    dec_emb = jax.random.normal(keys[1], (n_vocab, d_model), jnp.float32).at[PAD_IDX].set(0.0)
    out_w, out_b = _init_linear(keys[2], n_vocab, d_model)
    return dict(enc_tok_emb=enc_emb, dec_tok_emb=dec_emb,
                pe=_make_pe(max_len, d_model),
                enc_layers=enc_layers, dec_layers=dec_layers,
                out_w=out_w, out_b=out_b)


# -----------------------------------------------------------------------------
# Pure-JAX reference (mirrors the PyTorch forward, eval mode, f32 matmuls)
# -----------------------------------------------------------------------------
def _ref_linear(x, w, b):
    return jnp.matmul(x, w.T, precision=_HI) + b


def _ref_layer_norm(x, ln):
    mean = x.mean(-1, keepdims=True)
    std = jnp.sqrt(((x - mean) ** 2).sum(-1, keepdims=True) / (x.shape[-1] - 1))
    return ln["gamma"] * ((x - mean) / (std + LN_EPS)) + ln["beta"]


def _ref_gelu(x):
    return 0.5 * x * (1.0 + jnp.tanh(SQRT_2_OVER_PI * (x + GELU_C * x ** 3)))


def _ref_ffn(x, fp):
    return _ref_linear(_ref_gelu(_ref_linear(x, fp["w1"], fp["b1"])), fp["w2"], fp["b2"])


def _ref_mha(q_in, k_in, v_in, mask_bool, ap, n_head):
    B, S, D = q_in.shape
    d_k = D // n_head

    def heads(x, w, b):
        return _ref_linear(x, w, b).reshape(B, S, n_head, d_k).transpose(0, 2, 1, 3)

    Q = heads(q_in, ap["wq"], ap["bq"])
    K = heads(k_in, ap["wk"], ap["bk"])
    V = heads(v_in, ap["wv"], ap["bv"])
    s = jnp.einsum("bhqd,bhkd->bhqk", Q, K, precision=_HI) / math.sqrt(d_k)
    s = jnp.where(mask_bool[:, None, :, :], NEG_FILL, s)
    p = jax.nn.softmax(s, axis=-1)
    o = jnp.einsum("bhqk,bhkd->bhqd", p, V, precision=_HI)
    return o.transpose(0, 2, 1, 3).reshape(B, S, D)


def ref_transformer(enc_ids, dec_ids, params, *, n_head):
    B, S = enc_ids.shape
    enc_mask = jnp.broadcast_to((enc_ids == PAD_IDX)[:, None, :], (B, S, S))
    pe = params["pe"][:S][None, :, :]

    h = params["enc_tok_emb"][enc_ids] + pe
    for lp in params["enc_layers"]:
        h = h + _ref_layer_norm(_ref_mha(h, h, h, enc_mask, lp["attn"], n_head), lp["ln1"])
        h = h + _ref_layer_norm(_ref_ffn(h, lp["ffn"]), lp["ln2"])
    enc_out = h

    d = params["dec_tok_emb"][dec_ids] + pe
    for lp in params["dec_layers"]:
        d2 = d + _ref_layer_norm(_ref_mha(d, enc_out, enc_out, enc_mask, lp["cross"], n_head),
                                 lp["ln2"])
        d = d2 + _ref_layer_norm(_ref_ffn(d2, lp["ffn"]), lp["ln2"])

    return _ref_linear(d, params["out_w"], params["out_b"])


if __name__ == "__main__":
    # args: d_model=32, n_head=4, seq_len=8, d_ff=64, n_vocab=128, n_layers=2,
    #       max_len=16, padding_idx=0, dropout -> eval (identity); batch=2.
    B, S, D, H = 2, 8, 32, 4
    D_FF, V, N_LAYERS, MAX_LEN = 64, 128, 2, 16

    root = jax.random.PRNGKey(0)
    kp, ke, kd = jax.random.split(root, 3)
    params = init_params(kp, seq_len=S, d_model=D, d_ff=D_FF, n_vocab=V,
                         n_layers=N_LAYERS, max_len=MAX_LEN)

    enc_ids = jax.random.randint(ke, (B, S), 0, V, dtype=jnp.int32)
    dec_ids = jax.random.randint(kd, (B, S), 0, V, dtype=jnp.int32)
    # force a few encoder padding tokens so the masked-softmax path is exercised
    enc_ids = enc_ids.at[:, -1].set(PAD_IDX)
    enc_ids = enc_ids.at[0, -2].set(PAD_IDX)

    fwd = jax.jit(functools.partial(transformer_forward, n_head=H))
    out = jax.block_until_ready(fwd(enc_ids, dec_ids, params))

    expected = ref_transformer(enc_ids, dec_ids, params, n_head=H)

    assert out.shape == (B, S, V)
    max_err = float(jnp.max(jnp.abs(out - expected)))
    # tolerance accounts for the EUP approximate reciprocals (softmax + LN)
    assert jnp.allclose(out, expected, atol=3e-2, rtol=3e-2), f"max|err|={max_err}"
    print("KERNEL_OK")
</pallas_src>

<mosaic_0001>
module attributes {stable_mosaic.version = 11 : i64} {
  func.func @_out_proj_kernel(%arg0: i32, %arg1: i32, %arg2: memref<16x32xf32, #tpu.memory_space<vmem>>, %arg3: memref<32x128xf32, #tpu.memory_space<vmem>>, %arg4: memref<1x128xf32, #tpu.memory_space<vmem>>, %arg5: memref<16x128xf32, #tpu.memory_space<vmem>>) attributes {dimension_semantics = [#tpu.dimension_semantics<parallel>, #tpu.dimension_semantics<parallel>], iteration_bounds = array<i64: 1, 1>, scalar_prefetch = 0 : i64, scratch_operands = 0 : i64, tpu.core_type = #tpu.core_type<tc>, window_params = [{transform_indices = @transform_0, window_bounds = array<i64: 16, 32>}, {transform_indices = @transform_1, window_bounds = array<i64: 32, 128>}, {transform_indices = @transform_2, window_bounds = array<i64: 1, 128>}, {transform_indices = @transform_3, window_bounds = array<i64: 16, 128>}]} {
    %c0 = arith.constant 0 : index
    %c0_0 = arith.constant 0 : index
    %0 = vector.load %arg2[%c0, %c0_0] : memref<16x32xf32, #tpu.memory_space<vmem>>, vector<16x32xf32>
    %c0_1 = arith.constant 0 : index
    %c0_2 = arith.constant 0 : index
    %1 = vector.load %arg3[%c0_1, %c0_2] : memref<32x128xf32, #tpu.memory_space<vmem>>, vector<32x128xf32>
    %cst = arith.constant dense<0.000000e+00> : vector<16x128xf32>
    %2 = tpu.matmul %0, %1, %cst {dimension_numbers = #tpu.dot_dimension_numbers<[1], [0], [0], [1], [0, 0, 1, 1], [], []>} : vector<16x32xf32>, vector<32x128xf32>, vector<16x128xf32> -> vector<16x128xf32>
    %c0_3 = arith.constant 0 : index
    %c0_4 = arith.constant 0 : index
    %3 = vector.load %arg4[%c0_3, %c0_4] : memref<1x128xf32, #tpu.memory_space<vmem>>, vector<1x128xf32>
    %4 = vector.broadcast %3 : vector<1x128xf32> to vector<16x128xf32>
    %5 = arith.addf %2, %4 : vector<16x128xf32>
    %c0_5 = arith.constant 0 : index
    %c0_6 = arith.constant 0 : index
    %6 = vector.load %arg5[%c0_5, %c0_6] : memref<16x128xf32, #tpu.memory_space<vmem>>, vector<16x128xf32>
    tpu.vector_store %arg5[%c0_5, %c0_6], %5 {strides = array<i32>} : memref<16x128xf32, #tpu.memory_space<vmem>>, vector<16x128xf32>,
    return
  }
  func.func @transform_0(%arg0: i32, %arg1: i32) -> (i32, i32) {
    %c0_i32 = arith.constant 0 : i32
    %c0_i32_0 = arith.constant 0 : i32
    return %arg0, %c0_i32 : i32, i32
  }
  func.func @transform_1(%arg0: i32, %arg1: i32) -> (i32, i32) {
    %c0_i32 = arith.constant 0 : i32
    %c0_i32_0 = arith.constant 0 : i32
    return %c0_i32, %arg1 : i32, i32
  }
  func.func @transform_2(%arg0: i32, %arg1: i32) -> (i32, i32) {
    %c0_i32 = arith.constant 0 : i32
    %c0_i32_0 = arith.constant 0 : i32
    return %c0_i32, %arg1 : i32, i32
  }
  func.func @transform_3(%arg0: i32, %arg1: i32) -> (i32, i32) {
    %c0_i32 = arith.constant 0 : i32
    return %arg0, %arg1 : i32, i32
  }
}

module attributes {stable_mosaic.version = 11 : i64} {
  func.func @_layer_kernel(%arg0: i32, %arg1: memref<1x8x32xf32, #tpu.memory_space<vmem>>, %arg2: memref<1x8x32xf32, #tpu.memory_space<vmem>>, %arg3: memref<1x1x8xf32, #tpu.memory_space<vmem>>, %arg4: memref<32x32xf32, #tpu.memory_space<vmem>>, %arg5: memref<1x32xf32, #tpu.memory_space<vmem>>, %arg6: memref<32x32xf32, #tpu.memory_space<vmem>>, %arg7: memref<1x32xf32, #tpu.memory_space<vmem>>, %arg8: memref<32x32xf32, #tpu.memory_space<vmem>>, %arg9: memref<1x32xf32, #tpu.memory_space<vmem>>, %arg10: memref<1x8x32xf32, #tpu.memory_space<vmem>>, %arg11: memref<1x8x32xf32, #tpu.memory_space<vmem>>, %arg12: memref<32x64xf32, #tpu.memory_space<vmem>>, %arg13: memref<1x64xf32, #tpu.memory_space<vmem>>, %arg14: memref<64x32xf32, #tpu.memory_space<vmem>>, %arg15: memref<1x32xf32, #tpu.memory_space<vmem>>, %arg16: memref<1x8x32xf32, #tpu.memory_space<vmem>>, %arg17: memref<1x8x32xf32, #tpu.memory_space<vmem>>, %arg18: memref<1x8x32xf32, #tpu.memory_space<vmem>>, %arg19: memref<8x32xf32, #tpu.memory_space<vmem>>) attributes {dimension_semantics = [#tpu.dimension_semantics<parallel>], iteration_bounds = array<i64: 2>, scalar_prefetch = 0 : i64, scratch_operands = 1 : i64, tpu.core_type = #tpu.core_type<tc>, window_params = [{transform_indices = @transform_0, window_bounds = array<i64: 1, 8, 32>}, {transform_indices = @transform_1, window_bounds = array<i64: 1, 8, 32>}, {transform_indices = @transform_2, window_bounds = array<i64: 1, 1, 8>}, {pipeline_mode = #tpu.pipeline_mode<synchronous>, transform_indices = @transform_3, window_bounds = array<i64: 32, 32>}, {pipeline_mode = #tpu.pipeline_mode<synchronous>, transform_indices = @transform_4, window_bounds = array<i64: 1, 32>}, {pipeline_mode = #tpu.pipeline_mode<synchronous>, transform_indices = @transform_5, window_bounds = array<i64: 32, 32>}, {pipeline_mode = #tpu.pipeline_mode<synchronous>, transform_indices = @transform_6, window_bounds = array<i64: 1, 32>}, {pipeline_mode = #tpu.pipeline_mode<synchronous>, transform_indices = @transform_7, window_bounds = array<i64: 32, 32>}, {pipeline_mode = #tpu.pipeline_mode<synchronous>, transform_indices = @transform_8, window_bounds = array<i64: 1, 32>}, {pipeline_mode = #tpu.pipeline_mode<synchronous>, transform_indices = @transform_9, window_bounds = array<i64: 1, 8, 32>}, {pipeline_mode = #tpu.pipeline_mode<synchronous>, transform_indices = @transform_10, window_bounds = array<i64: 1, 8, 32>}, {pipeline_mode = #tpu.pipeline_mode<synchronous>, transform_indices = @transform_11, window_bounds = array<i64: 32, 64>}, {pipeline_mode = #tpu.pipeline_mode<synchronous>, transform_indices = @transform_12, window_bounds = array<i64: 1, 64>}, {pipeline_mode = #tpu.pipeline_mode<synchronous>, transform_indices = @transform_13, window_bounds = array<i64: 64, 32>}, {pipeline_mode = #tpu.pipeline_mode<synchronous>, transform_indices = @transform_14, window_bounds = array<i64: 1, 32>}, {pipeline_mode = #tpu.pipeline_mode<synchronous>, transform_indices = @transform_15, window_bounds = array<i64: 1, 8, 32>}, {pipeline_mode = #tpu.pipeline_mode<synchronous>, transform_indices = @transform_16, window_bounds = array<i64: 1, 8, 32>}, {transform_indices = @transform_17, window_bounds = array<i64: 1, 8, 32>}]} {
    %c0 = arith.constant 0 : index
    %c0_0 = arith.constant 0 : index
    %c0_1 = arith.constant 0 : index
    %0 = vector.load %arg1[%c0, %c0_0, %c0_1] : memref<1x8x32xf32, #tpu.memory_space<vmem>>, vector<1x8x32xf32>
    %1 = vector.shape_cast %0 : vector<1x8x32xf32> to vector<8x32xf32>
    %c0_2 = arith.constant 0 : index
    %c0_3 = arith.constant 0 : index
    %c0_4 = arith.constant 0 : index
    %2 = vector.load %arg2[%c0_2, %c0_3, %c0_4] : memref<1x8x32xf32, #tpu.memory_space<vmem>>, vector<1x8x32xf32>
    %3 = vector.shape_cast %2 : vector<1x8x32xf32> to vector<8x32xf32>
    %c0_5 = arith.constant 0 : index
    %c0_6 = arith.constant 0 : index
    %c0_7 = arith.constant 0 : index
    %4 = vector.load %arg3[%c0_5, %c0_6, %c0_7] : memref<1x1x8xf32, #tpu.memory_space<vmem>>, vector<1x1x8xf32>
    %5 = vector.shape_cast %4 : vector<1x1x8xf32> to vector<1x8xf32>
    %cst = arith.constant 0.000000e+00 : f32
    %6 = vector.broadcast %cst : f32 to vector<1x8xf32>
    %7 = arith.cmpf ogt, %5, %6 : vector<1x8xf32>
    %c0_8 = arith.constant 0 : index
    %c0_9 = arith.constant 0 : index
    %8 = vector.load %arg4[%c0_8, %c0_9] : memref<32x32xf32, #tpu.memory_space<vmem>>, vector<32x32xf32>
    %cst_10 = arith.constant dense<0.000000e+00> : vector<8x32xf32>
    %9 = tpu.matmul %1, %8, %cst_10 {dimension_numbers = #tpu.dot_dimension_numbers<[1], [0], [0], [1], [0, 0, 1, 1], [], []>} : vector<8x32xf32>, vector<32x32xf32>, vector<8x32xf32> -> vector<8x32xf32>
    %c0_11 = arith.constant 0 : index
    %c0_12 = arith.constant 0 : index
    %10 = vector.load %arg5[%c0_11, %c0_12] : memref<1x32xf32, #tpu.memory_space<vmem>>, vector<1x32xf32>
    %11 = vector.broadcast %10 : vector<1x32xf32> to vector<8x32xf32>
    %12 = arith.addf %9, %11 : vector<8x32xf32>
    %c0_13 = arith.constant 0 : index
    %c0_14 = arith.constant 0 : index
    %13 = vector.load %arg6[%c0_13, %c0_14] : memref<32x32xf32, #tpu.memory_space<vmem>>, vector<32x32xf32>
    %cst_15 = arith.constant dense<0.000000e+00> : vector<8x32xf32>
    %14 = tpu.matmul %3, %13, %cst_15 {dimension_numbers = #tpu.dot_dimension_numbers<[1], [0], [0], [1], [0, 0, 1, 1], [], []>} : vector<8x32xf32>, vector<32x32xf32>, vector<8x32xf32> -> vector<8x32xf32>
    %c0_16 = arith.constant 0 : index
    %c0_17 = arith.constant 0 : index
    %15 = vector.load %arg7[%c0_16, %c0_17] : memref<1x32xf32, #tpu.memory_space<vmem>>, vector<1x32xf32>
    %16 = vector.broadcast %15 : vector<1x32xf32> to vector<8x32xf32>
    %17 = arith.addf %14, %16 : vector<8x32xf32>
    %c0_18 = arith.constant 0 : index
    %c0_19 = arith.constant 0 : index
    %18 = vector.load %arg8[%c0_18, %c0_19] : memref<32x32xf32, #tpu.memory_space<vmem>>, vector<32x32xf32>
    %cst_20 = arith.constant dense<0.000000e+00> : vector<8x32xf32>
    %19 = tpu.matmul %3, %18, %cst_20 {dimension_numbers = #tpu.dot_dimension_numbers<[1], [0], [0], [1], [0, 0, 1, 1], [], []>} : vector<8x32xf32>, vector<32x32xf32>, vector<8x32xf32> -> vector<8x32xf32>
    %c0_21 = arith.constant 0 : index
    %c0_22 = arith.constant 0 : index
    %20 = vector.load %arg9[%c0_21, %c0_22] : memref<1x32xf32, #tpu.memory_space<vmem>>, vector<1x32xf32>
    %21 = vector.broadcast %20 : vector<1x32xf32> to vector<8x32xf32>
    %22 = arith.addf %19, %21 : vector<8x32xf32>
    %cst_23 = arith.constant 0.353553385 : f32
    %23 = vector.broadcast %cst_23 : f32 to vector<8x32xf32>
    %24 = arith.mulf %12, %23 : vector<8x32xf32>
    %25 = vector.extract_strided_slice %24 {offsets = [0, 0], sizes = [8, 8], strides = [1, 1]} : vector<8x32xf32> to vector<8x8xf32>
    %26 = vector.extract_strided_slice %17 {offsets = [0, 0], sizes = [8, 8], strides = [1, 1]} : vector<8x32xf32> to vector<8x8xf32>
    %27 = vector.extract_strided_slice %22 {offsets = [0, 0], sizes = [8, 8], strides = [1, 1]} : vector<8x32xf32> to vector<8x8xf32>
    %cst_24 = arith.constant dense<0.000000e+00> : vector<8x8xf32>
    %28 = tpu.matmul %25, %26, %cst_24 {dimension_numbers = #tpu.dot_dimension_numbers<[1], [1], [0], [0], [0, 0, 1, 0], [], []>} : vector<8x8xf32>, vector<8x8xf32>, vector<8x8xf32> -> vector<8x8xf32>
    %cst_25 = arith.constant -1.000000e+08 : f32
    %29 = vector.shape_cast %7 : vector<1x8xi1> to vector<1x8xi1>
    %30 = vector.broadcast %29 : vector<1x8xi1> to vector<8x8xi1>
    %31 = vector.broadcast %cst_25 : f32 to vector<8x8xf32>
    %32 = arith.select %30, %31, %28 : vector<8x8xi1>, vector<8x8xf32>
    %cst_26 = arith.constant dense<0xFF800000> : vector<8xf32>
    %33 = vector.multi_reduction <maximumf>, %32, %cst_26 [1] : vector<8x8xf32> to vector<8xf32>
    %34 = vector.shape_cast %33 : vector<8xf32> to vector<8x1xf32>
    %35 = vector.broadcast %34 : vector<8x1xf32> to vector<8x8xf32>
    %36 = arith.subf %32, %35 : vector<8x8xf32>
    %37 = math.exp %36 : vector<8x8xf32>
    %cst_27 = arith.constant dense<0.000000e+00> : vector<8xf32>
    %38 = vector.multi_reduction <add>, %37, %cst_27 [1] : vector<8x8xf32> to vector<8xf32>
    %39 = vector.shape_cast %38 : vector<8xf32> to vector<8x1xf32>
    %40 = tpu.reciprocal %39 {approx = true} : vector<8x1xf32> -> vector<8x1xf32>
    %41 = vector.broadcast %40 : vector<8x1xf32> to vector<8x8xf32>
    %42 = arith.mulf %37, %41 : vector<8x8xf32>
    %cst_28 = arith.constant dense<0.000000e+00> : vector<8x8xf32>
    %43 = tpu.matmul %42, %27, %cst_28 {dimension_numbers = #tpu.dot_dimension_numbers<[1], [0], [0], [1], [0, 0, 1, 1], [], []>} : vector<8x8xf32>, vector<8x8xf32>, vector<8x8xf32> -> vector<8x8xf32>
    %c0_29 = arith.constant 0 : index
    %c0_30 = arith.constant 0 : index
    %44 = vector.load %arg19[%c0_29, %c0_30] : memref<8x32xf32, #tpu.memory_space<vmem>>, vector<8x8xf32>
    tpu.vector_store %arg19[%c0_29, %c0_30], %43 {strides = array<i32>} : memref<8x32xf32, #tpu.memory_space<vmem>>, vector<8x8xf32>,
    %45 = vector.extract_strided_slice %24 {offsets = [0, 8], sizes = [8, 8], strides = [1, 1]} : vector<8x32xf32> to vector<8x8xf32>
    %46 = vector.extract_strided_slice %17 {offsets = [0, 8], sizes = [8, 8], strides = [1, 1]} : vector<8x32xf32> to vector<8x8xf32>
    %47 = vector.extract_strided_slice %22 {offsets = [0, 8], sizes = [8, 8], strides = [1, 1]} : vector<8x32xf32> to vector<8x8xf32>
    %cst_31 = arith.constant dense<0.000000e+00> : vector<8x8xf32>
    %48 = tpu.matmul %45, %46, %cst_31 {dimension_numbers = #tpu.dot_dimension_numbers<[1], [1], [0], [0], [0, 0, 1, 0], [], []>} : vector<8x8xf32>, vector<8x8xf32>, vector<8x8xf32> -> vector<8x8xf32>
    %cst_32 = arith.constant -1.000000e+08 : f32
    %49 = vector.shape_cast %7 : vector<1x8xi1> to vector<1x8xi1>
    %50 = vector.broadcast %49 : vector<1x8xi1> to vector<8x8xi1>
    %51 = vector.broadcast %cst_32 : f32 to vector<8x8xf32>
    %52 = arith.select %50, %51, %48 : vector<8x8xi1>, vector<8x8xf32>
    %cst_33 = arith.constant dense<0xFF800000> : vector<8xf32>
    %53 = vector.multi_reduction <maximumf>, %52, %cst_33 [1] : vector<8x8xf32> to vector<8xf32>
    %54 = vector.shape_cast %53 : vector<8xf32> to vector<8x1xf32>
    %55 = vector.broadcast %54 : vector<8x1xf32> to vector<8x8xf32>
    %56 = arith.subf %52, %55 : vector<8x8xf32>
    %57 = math.exp %56 : vector<8x8xf32>
    %cst_34 = arith.constant dense<0.000000e+00> : vector<8xf32>
    %58 = vector.multi_reduction <add>, %57, %cst_34 [1] : vector<8x8xf32> to vector<8xf32>
    %59 = vector.shape_cast %58 : vector<8xf32> to vector<8x1xf32>
    %60 = tpu.reciprocal %59 {approx = true} : vector<8x1xf32> -> vector<8x1xf32>
    %61 = vector.broadcast %60 : vector<8x1xf32> to vector<8x8xf32>
    %62 = arith.mulf %57, %61 : vector<8x8xf32>
    %cst_35 = arith.constant dense<0.000000e+00> : vector<8x8xf32>
    %63 = tpu.matmul %62, %47, %cst_35 {dimension_numbers = #tpu.dot_dimension_numbers<[1], [0], [0], [1], [0, 0, 1, 1], [], []>} : vector<8x8xf32>, vector<8x8xf32>, vector<8x8xf32> -> vector<8x8xf32>
    %c0_36 = arith.constant 0 : index
    %c8 = arith.constant 8 : index
    %64 = vector.load %arg19[%c0_36, %c8] : memref<8x32xf32, #tpu.memory_space<vmem>>, vector<8x8xf32>
    tpu.vector_store %arg19[%c0_36, %c8], %63 {strides = array<i32>} : memref<8x32xf32, #tpu.memory_space<vmem>>, vector<8x8xf32>,
    %65 = vector.extract_strided_slice %24 {offsets = [0, 16], sizes = [8, 8], strides = [1, 1]} : vector<8x32xf32> to vector<8x8xf32>
    %66 = vector.extract_strided_slice %17 {offsets = [0, 16], sizes = [8, 8], strides = [1, 1]} : vector<8x32xf32> to vector<8x8xf32>
    %67 = vector.extract_strided_slice %22 {offsets = [0, 16], sizes = [8, 8], strides = [1, 1]} : vector<8x32xf32> to vector<8x8xf32>
    %cst_37 = arith.constant dense<0.000000e+00> : vector<8x8xf32>
    %68 = tpu.matmul %65, %66, %cst_37 {dimension_numbers = #tpu.dot_dimension_numbers<[1], [1], [0], [0], [0, 0, 1, 0], [], []>} : vector<8x8xf32>, vector<8x8xf32>, vector<8x8xf32> -> vector<8x8xf32>
    %cst_38 = arith.constant -1.000000e+08 : f32
    %69 = vector.shape_cast %7 : vector<1x8xi1> to vector<1x8xi1>
    %70 = vector.broadcast %69 : vector<1x8xi1> to vector<8x8xi1>
    %71 = vector.broadcast %cst_38 : f32 to vector<8x8xf32>
    %72 = arith.select %70, %71, %68 : vector<8x8xi1>, vector<8x8xf32>
    %cst_39 = arith.constant dense<0xFF800000> : vector<8xf32>
    %73 = vector.multi_reduction <maximumf>, %72, %cst_39 [1] : vector<8x8xf32> to vector<8xf32>
    %74 = vector.shape_cast %73 : vector<8xf32> to vector<8x1xf32>
    %75 = vector.broadcast %74 : vector<8x1xf32> to vector<8x8xf32>
    %76 = arith.subf %72, %75 : vector<8x8xf32>
    %77 = math.exp %76 : vector<8x8xf32>
    %cst_40 = arith.constant dense<0.000000e+00> : vector<8xf32>
    %78 = vector.multi_reduction <add>, %77, %cst_40 [1] : vector<8x8xf32> to vector<8xf32>
    %79 = vector.shape_cast %78 : vector<8xf32> to vector<8x1xf32>
    %80 = tpu.reciprocal %79 {approx = true} : vector<8x1xf32> -> vector<8x1xf32>
    %81 = vector.broadcast %80 : vector<8x1xf32> to vector<8x8xf32>
    %82 = arith.mulf %77, %81 : vector<8x8xf32>
    %cst_41 = arith.constant dense<0.000000e+00> : vector<8x8xf32>
    %83 = tpu.matmul %82, %67, %cst_41 {dimension_numbers = #tpu.dot_dimension_numbers<[1], [0], [0], [1], [0, 0, 1, 1], [], []>} : vector<8x8xf32>, vector<8x8xf32>, vector<8x8xf32> -> vector<8x8xf32>
    %c0_42 = arith.constant 0 : index
    %c16 = arith.constant 16 : index
    %84 = vector.load %arg19[%c0_42, %c16] : memref<8x32xf32, #tpu.memory_space<vmem>>, vector<8x8xf32>
    tpu.vector_store %arg19[%c0_42, %c16], %83 {strides = array<i32>} : memref<8x32xf32, #tpu.memory_space<vmem>>, vector<8x8xf32>,
    %85 = vector.extract_strided_slice %24 {offsets = [0, 24], sizes = [8, 8], strides = [1, 1]} : vector<8x32xf32> to vector<8x8xf32>
    %86 = vector.extract_strided_slice %17 {offsets = [0, 24], sizes = [8, 8], strides = [1, 1]} : vector<8x32xf32> to vector<8x8xf32>
    %87 = vector.extract_strided_slice %22 {offsets = [0, 24], sizes = [8, 8], strides = [1, 1]} : vector<8x32xf32> to vector<8x8xf32>
    %cst_43 = arith.constant dense<0.000000e+00> : vector<8x8xf32>
    %88 = tpu.matmul %85, %86, %cst_43 {dimension_numbers = #tpu.dot_dimension_numbers<[1], [1], [0], [0], [0, 0, 1, 0], [], []>} : vector<8x8xf32>, vector<8x8xf32>, vector<8x8xf32> -> vector<8x8xf32>
    %cst_44 = arith.constant -1.000000e+08 : f32
    %89 = vector.shape_cast %7 : vector<1x8xi1> to vector<1x8xi1>
    %90 = vector.broadcast %89 : vector<1x8xi1> to vector<8x8xi1>
    %91 = vector.broadcast %cst_44 : f32 to vector<8x8xf32>
    %92 = arith.select %90, %91, %88 : vector<8x8xi1>, vector<8x8xf32>
    %cst_45 = arith.constant dense<0xFF800000> : vector<8xf32>
    %93 = vector.multi_reduction <maximumf>, %92, %cst_45 [1] : vector<8x8xf32> to vector<8xf32>
    %94 = vector.shape_cast %93 : vector<8xf32> to vector<8x1xf32>
    %95 = vector.broadcast %94 : vector<8x1xf32> to vector<8x8xf32>
    %96 = arith.subf %92, %95 : vector<8x8xf32>
    %97 = math.exp %96 : vector<8x8xf32>
    %cst_46 = arith.constant dense<0.000000e+00> : vector<8xf32>
    %98 = vector.multi_reduction <add>, %97, %cst_46 [1] : vector<8x8xf32> to vector<8xf32>
    %99 = vector.shape_cast %98 : vector<8xf32> to vector<8x1xf32>
    %100 = tpu.reciprocal %99 {approx = true} : vector<8x1xf32> -> vector<8x1xf32>
    %101 = vector.broadcast %100 : vector<8x1xf32> to vector<8x8xf32>
    %102 = arith.mulf %97, %101 : vector<8x8xf32>
    %cst_47 = arith.constant dense<0.000000e+00> : vector<8x8xf32>
    %103 = tpu.matmul %102, %87, %cst_47 {dimension_numbers = #tpu.dot_dimension_numbers<[1], [0], [0], [1], [0, 0, 1, 1], [], []>} : vector<8x8xf32>, vector<8x8xf32>, vector<8x8xf32> -> vector<8x8xf32>
    %c0_48 = arith.constant 0 : index
    %c24 = arith.constant 24 : index
    %104 = vector.load %arg19[%c0_48, %c24] : memref<8x32xf32, #tpu.memory_space<vmem>>, vector<8x8xf32>
    tpu.vector_store %arg19[%c0_48, %c24], %103 {strides = array<i32>} : memref<8x32xf32, #tpu.memory_space<vmem>>, vector<8x8xf32>,
    %c0_49 = arith.constant 0 : index
    %c0_50 = arith.constant 0 : index
    %105 = vector.load %arg19[%c0_49, %c0_50] : memref<8x32xf32, #tpu.memory_space<vmem>>, vector<8x32xf32>
    %c0_51 = arith.constant 0 : index
    %c0_52 = arith.constant 0 : index
    %c0_53 = arith.constant 0 : index
    %106 = vector.load %arg10[%c0_51, %c0_52, %c0_53] : memref<1x8x32xf32, #tpu.memory_space<vmem>>, vector<1x8x32xf32>
    %107 = vector.shape_cast %106 : vector<1x8x32xf32> to vector<8x32xf32>
    %c0_54 = arith.constant 0 : index
    %c0_55 = arith.constant 0 : index
    %c0_56 = arith.constant 0 : index
    %108 = vector.load %arg11[%c0_54, %c0_55, %c0_56] : memref<1x8x32xf32, #tpu.memory_space<vmem>>, vector<1x8x32xf32>
    %109 = vector.shape_cast %108 : vector<1x8x32xf32> to vector<8x32xf32>
    %cst_57 = arith.constant dense<0.000000e+00> : vector<8xf32>
    %110 = vector.multi_reduction <add>, %105, %cst_57 [1] : vector<8x32xf32> to vector<8xf32>
    %111 = vector.shape_cast %110 : vector<8xf32> to vector<8x1xf32>
    %cst_58 = arith.constant 3.200000e+01 : f32
    %112 = vector.broadcast %cst_58 : f32 to vector<8x1xf32>
    %113 = arith.divf %111, %112 : vector<8x1xf32>
    %114 = vector.broadcast %113 : vector<8x1xf32> to vector<8x32xf32>
    %115 = arith.subf %105, %114 : vector<8x32xf32>
    %116 = arith.mulf %115, %115 : vector<8x32xf32>
    %cst_59 = arith.constant dense<0.000000e+00> : vector<8xf32>
    %117 = vector.multi_reduction <add>, %116, %cst_59 [1] : vector<8x32xf32> to vector<8xf32>
    %118 = vector.shape_cast %117 : vector<8xf32> to vector<8x1xf32>
    %cst_60 = arith.constant 3.100000e+01 : f32
    %119 = vector.broadcast %cst_60 : f32 to vector<8x1xf32>
    %120 = arith.divf %118, %119 : vector<8x1xf32>
    %121 = math.sqrt %120 : vector<8x1xf32>
    %cst_61 = arith.constant 9.99999993E-9 : f32
    %122 = vector.broadcast %cst_61 : f32 to vector<8x1xf32>
    %123 = arith.addf %121, %122 : vector<8x1xf32>
    %124 = tpu.reciprocal %123 {approx = true} : vector<8x1xf32> -> vector<8x1xf32>
    %125 = vector.broadcast %124 : vector<8x1xf32> to vector<8x32xf32>
    %126 = arith.mulf %115, %125 : vector<8x32xf32>
    %127 = arith.mulf %107, %126 : vector<8x32xf32>
    %128 = arith.addf %127, %109 : vector<8x32xf32>
    %129 = arith.addf %1, %128 : vector<8x32xf32>
    %c0_62 = arith.constant 0 : index
    %c0_63 = arith.constant 0 : index
    %130 = vector.load %arg12[%c0_62, %c0_63] : memref<32x64xf32, #tpu.memory_space<vmem>>, vector<32x64xf32>
    %cst_64 = arith.constant dense<0.000000e+00> : vector<8x64xf32>
    %131 = tpu.matmul %129, %130, %cst_64 {dimension_numbers = #tpu.dot_dimension_numbers<[1], [0], [0], [1], [0, 0, 1, 1], [], []>} : vector<8x32xf32>, vector<32x64xf32>, vector<8x64xf32> -> vector<8x64xf32>
    %c0_65 = arith.constant 0 : index
    %c0_66 = arith.constant 0 : index
    %132 = vector.load %arg13[%c0_65, %c0_66] : memref<1x64xf32, #tpu.memory_space<vmem>>, vector<1x64xf32>
    %133 = vector.broadcast %132 : vector<1x64xf32> to vector<8x64xf32>
    %134 = arith.addf %131, %133 : vector<8x64xf32>
    %cst_67 = arith.constant 5.000000e-01 : f32
    %135 = vector.broadcast %cst_67 : f32 to vector<8x64xf32>
    %136 = arith.mulf %135, %134 : vector<8x64xf32>
    %cst_68 = arith.constant 4.471500e-03 : f32
    %137 = vector.broadcast %cst_68 : f32 to vector<8x64xf32>
    %138 = arith.mulf %137, %134 : vector<8x64xf32>
    %139 = arith.mulf %138, %134 : vector<8x64xf32>
    %140 = arith.mulf %139, %134 : vector<8x64xf32>
    %141 = arith.addf %134, %140 : vector<8x64xf32>
    %cst_69 = arith.constant 0.797884583 : f32
    %142 = vector.broadcast %cst_69 : f32 to vector<8x64xf32>
    %143 = arith.mulf %142, %141 : vector<8x64xf32>
    %144 = math.tanh %143 : vector<8x64xf32>
    %cst_70 = arith.constant 1.000000e+00 : f32
    %145 = vector.broadcast %cst_70 : f32 to vector<8x64xf32>
    %146 = arith.addf %145, %144 : vector<8x64xf32>
    %147 = arith.mulf %136, %146 : vector<8x64xf32>
    %c0_71 = arith.constant 0 : index
    %c0_72 = arith.constant 0 : index
    %148 = vector.load %arg14[%c0_71, %c0_72] : memref<64x32xf32, #tpu.memory_space<vmem>>, vector<64x32xf32>
    %cst_73 = arith.constant dense<0.000000e+00> : vector<8x32xf32>
    %149 = tpu.matmul %147, %148, %cst_73 {dimension_numbers = #tpu.dot_dimension_numbers<[1], [0], [0], [1], [0, 0, 1, 1], [], []>} : vector<8x64xf32>, vector<64x32xf32>, vector<8x32xf32> -> vector<8x32xf32>
    %c0_74 = arith.constant 0 : index
    %c0_75 = arith.constant 0 : index
    %150 = vector.load %arg15[%c0_74, %c0_75] : memref<1x32xf32, #tpu.memory_space<vmem>>, vector<1x32xf32>
    %151 = vector.broadcast %150 : vector<1x32xf32> to vector<8x32xf32>
    %152 = arith.addf %149, %151 : vector<8x32xf32>
    %c0_76 = arith.constant 0 : index
    %c0_77 = arith.constant 0 : index
    %c0_78 = arith.constant 0 : index
    %153 = vector.load %arg16[%c0_76, %c0_77, %c0_78] : memref<1x8x32xf32, #tpu.memory_space<vmem>>, vector<1x8x32xf32>
    %154 = vector.shape_cast %153 : vector<1x8x32xf32> to vector<8x32xf32>
    %c0_79 = arith.constant 0 : index
    %c0_80 = arith.constant 0 : index
    %c0_81 = arith.constant 0 : index
    %155 = vector.load %arg17[%c0_79, %c0_80, %c0_81] : memref<1x8x32xf32, #tpu.memory_space<vmem>>, vector<1x8x32xf32>
    %156 = vector.shape_cast %155 : vector<1x8x32xf32> to vector<8x32xf32>
    %cst_82 = arith.constant dense<0.000000e+00> : vector<8xf32>
    %157 = vector.multi_reduction <add>, %152, %cst_82 [1] : vector<8x32xf32> to vector<8xf32>
    %158 = vector.shape_cast %157 : vector<8xf32> to vector<8x1xf32>
    %cst_83 = arith.constant 3.200000e+01 : f32
    %159 = vector.broadcast %cst_83 : f32 to vector<8x1xf32>
    %160 = arith.divf %158, %159 : vector<8x1xf32>
    %161 = vector.broadcast %160 : vector<8x1xf32> to vector<8x32xf32>
    %162 = arith.subf %152, %161 : vector<8x32xf32>
    %163 = arith.mulf %162, %162 : vector<8x32xf32>
    %cst_84 = arith.constant dense<0.000000e+00> : vector<8xf32>
    %164 = vector.multi_reduction <add>, %163, %cst_84 [1] : vector<8x32xf32> to vector<8xf32>
    %165 = vector.shape_cast %164 : vector<8xf32> to vector<8x1xf32>
    %cst_85 = arith.constant 3.100000e+01 : f32
    %166 = vector.broadcast %cst_85 : f32 to vector<8x1xf32>
    %167 = arith.divf %165, %166 : vector<8x1xf32>
    %168 = math.sqrt %167 : vector<8x1xf32>
    %cst_86 = arith.constant 9.99999993E-9 : f32
    %169 = vector.broadcast %cst_86 : f32 to vector<8x1xf32>
    %170 = arith.addf %168, %169 : vector<8x1xf32>
    %171 = tpu.reciprocal %170 {approx = true} : vector<8x1xf32> -> vector<8x1xf32>
    %172 = vector.broadcast %171 : vector<8x1xf32> to vector<8x32xf32>
    %173 = arith.mulf %162, %172 : vector<8x32xf32>
    %174 = arith.mulf %154, %173 : vector<8x32xf32>
    %175 = arith.addf %174, %156 : vector<8x32xf32>
    %176 = arith.addf %129, %175 : vector<8x32xf32>
    %c0_87 = arith.constant 0 : index
    %c0_88 = arith.constant 0 : index
    %c0_89 = arith.constant 0 : index
    %177 = vector.load %arg18[%c0_87, %c0_88, %c0_89] : memref<1x8x32xf32, #tpu.memory_space<vmem>>, vector<1x8x32xf32>
    %178 = vector.shape_cast %177 : vector<1x8x32xf32> to vector<8x32xf32>
    %179 = vector.shape_cast %176 : vector<8x32xf32> to vector<1x8x32xf32>
    tpu.vector_store %arg18[%c0_87, %c0_88, %c0_89], %179 {strides = array<i32>} : memref<1x8x32xf32, #tpu.memory_space<vmem>>, vector<1x8x32xf32>,
    return
  }
  func.func @transform_0(%arg0: i32) -> (i32, i32, i32) {
    %c0_i32 = arith.constant 0 : i32
    %c0_i32_0 = arith.constant 0 : i32
    %c0_i32_1 = arith.constant 0 : i32
    return %arg0, %c0_i32, %c0_i32_0 : i32, i32, i32
  }
  func.func @transform_1(%arg0: i32) -> (i32, i32, i32) {
    %c0_i32 = arith.constant 0 : i32
    %c0_i32_0 = arith.constant 0 : i32
    %c0_i32_1 = arith.constant 0 : i32
    return %arg0, %c0_i32, %c0_i32_0 : i32, i32, i32
  }
  func.func @transform_2(%arg0: i32) -> (i32, i32, i32) {
    %c0_i32 = arith.constant 0 : i32
    %c0_i32_0 = arith.constant 0 : i32
    %c0_i32_1 = arith.constant 0 : i32
    return %arg0, %c0_i32, %c0_i32_0 : i32, i32, i32
  }
  func.func @transform_3(%arg0: i32) -> (i32, i32) {
    %c0_i32 = arith.constant 0 : i32
    %c0_i32_0 = arith.constant 0 : i32
    %c0_i32_1 = arith.constant 0 : i32
    return %c0_i32, %c0_i32_0 : i32, i32
  }
  func.func @transform_4(%arg0: i32) -> (i32, i32) {
    %c0_i32 = arith.constant 0 : i32
    %c0_i32_0 = arith.constant 0 : i32
    %c0_i32_1 = arith.constant 0 : i32
    return %c0_i32, %c0_i32_0 : i32, i32
  }
  func.func @transform_5(%arg0: i32) -> (i32, i32) {
    %c0_i32 = arith.constant 0 : i32
    %c0_i32_0 = arith.constant 0 : i32
    %c0_i32_1 = arith.constant 0 : i32
    return %c0_i32, %c0_i32_0 : i32, i32
  }
  func.func @transform_6(%arg0: i32) -> (i32, i32) {
    %c0_i32 = arith.constant 0 : i32
    %c0_i32_0 = arith.constant 0 : i32
    %c0_i32_1 = arith.constant 0 : i32
    return %c0_i32, %c0_i32_0 : i32, i32
  }
  func.func @transform_7(%arg0: i32) -> (i32, i32) {
    %c0_i32 = arith.constant 0 : i32
    %c0_i32_0 = arith.constant 0 : i32
    %c0_i32_1 = arith.constant 0 : i32
    return %c0_i32, %c0_i32_0 : i32, i32
  }
  func.func @transform_8(%arg0: i32) -> (i32, i32) {
    %c0_i32 = arith.constant 0 : i32
    %c0_i32_0 = arith.constant 0 : i32
    %c0_i32_1 = arith.constant 0 : i32
    return %c0_i32, %c0_i32_0 : i32, i32
  }
  func.func @transform_9(%arg0: i32) -> (i32, i32, i32) {
    %c0_i32 = arith.constant 0 : i32
    %c0_i32_0 = arith.constant 0 : i32
    %c0_i32_1 = arith.constant 0 : i32
    %c0_i32_2 = arith.constant 0 : i32
    return %c0_i32, %c0_i32_0, %c0_i32_1 : i32, i32, i32
  }
  func.func @transform_10(%arg0: i32) -> (i32, i32, i32) {
    %c0_i32 = arith.constant 0 : i32
    %c0_i32_0 = arith.constant 0 : i32
    %c0_i32_1 = arith.constant 0 : i32
    %c0_i32_2 = arith.constant 0 : i32
    return %c0_i32, %c0_i32_0, %c0_i32_1 : i32, i32, i32
  }
  func.func @transform_11(%arg0: i32) -> (i32, i32) {
    %c0_i32 = arith.constant 0 : i32
    %c0_i32_0 = arith.constant 0 : i32
    %c0_i32_1 = arith.constant 0 : i32
    return %c0_i32, %c0_i32_0 : i32, i32
  }
  func.func @transform_12(%arg0: i32) -> (i32, i32) {
    %c0_i32 = arith.constant 0 : i32
    %c0_i32_0 = arith.constant 0 : i32
    %c0_i32_1 = arith.constant 0 : i32
    return %c0_i32, %c0_i32_0 : i32, i32
  }
  func.func @transform_13(%arg0: i32) -> (i32, i32) {
    %c0_i32 = arith.constant 0 : i32
    %c0_i32_0 = arith.constant 0 : i32
    %c0_i32_1 = arith.constant 0 : i32
    return %c0_i32, %c0_i32_0 : i32, i32
  }
  func.func @transform_14(%arg0: i32) -> (i32, i32) {
    %c0_i32 = arith.constant 0 : i32
    %c0_i32_0 = arith.constant 0 : i32
    %c0_i32_1 = arith.constant 0 : i32
    return %c0_i32, %c0_i32_0 : i32, i32
  }
  func.func @transform_15(%arg0: i32) -> (i32, i32, i32) {
    %c0_i32 = arith.constant 0 : i32
    %c0_i32_0 = arith.constant 0 : i32
    %c0_i32_1 = arith.constant 0 : i32
    %c0_i32_2 = arith.constant 0 : i32
    return %c0_i32, %c0_i32_0, %c0_i32_1 : i32, i32, i32
  }
  func.func @transform_16(%arg0: i32) -> (i32, i32, i32) {
    %c0_i32 = arith.constant 0 : i32
    %c0_i32_0 = arith.constant 0 : i32
    %c0_i32_1 = arith.constant 0 : i32
    %c0_i32_2 = arith.constant 0 : i32
    return %c0_i32, %c0_i32_0, %c0_i32_1 : i32, i32, i32
  }
  func.func @transform_17(%arg0: i32) -> (i32, i32, i32) {
    %c0_i32 = arith.constant 0 : i32
    %c0_i32_0 = arith.constant 0 : i32
    %c0_i32_1 = arith.constant 0 : i32
    return %arg0, %c0_i32, %c0_i32_0 : i32, i32, i32
  }
}

</mosaic_0001>

<llo_original>
// kernel: transformer_forward.9
$region0: #{transformer_forward.9}
  #allocation0 [shape = 'u32[]', space=smem, size = 0x4, offset = 0x4, fixed_abs, tag = 'smem constant byte address 0x4 - core index']
  #allocation1 [shape = 'u32[144,128]{1,0:T(1,128)}', space=vmem, size = 0x12000, scoped, tag = 'internal scratch']
  %s0 = inlined_call_operand.vmem [shape: f32[16,32], index: 0, kind: input, shape index: {}]
  %s1 = inlined_call_operand.vmem [shape: f32[32,128], index: 1, kind: input, shape index: {}]
  %s2 = inlined_call_operand.vmem [shape: f32[1,128], index: 2, kind: input, shape index: {}]
  %s3 = inlined_call_operand.hbm [shape: f32[16,128], index: 3, kind: output, shape index: {}]
  %s4 = sld [smem:[#allocation0]]
  $region22: #{transformer_forward.9} parent=0
    _
  %s6 = ssub.s32 1, %s4
  %s7 = scalar_select 0, %s6, %s4
  $region1: #{transformer_forward.9} parent=0
    #allocation2 [shape = 'u8[8192]{0}', space=vmem, size = 0x2000, scoped, tag = 'output window, operand 0, single buffered']
    #allocation3 [shape = 's32[1]{0}', space=sflag, size = 0x4, scoped, tag = 'scoped memory for transformer_forward.9']
    %8 = vsyncpa [#allocation3], 0
    // Predicated region
    $region2: #{transformer_forward.9} parent=1 // pred_check
      _
    $region3: #{transformer_forward.9} parent=1 // pred_check_branch
      %10 = sbr.rel (0) target = $region5
    $region4: #{transformer_forward.9} parent=1 // pred_region
      _
    $region5: #{transformer_forward.9} parent=1 // pred_fallthru
      _
    // Predicated region
    $region6: #{transformer_forward.9} parent=1 // pred_check
      _
    $region7: #{transformer_forward.9} parent=1 // pred_check_branch
      %12 = sbr.rel (0) target = $region9
    $region8: #{transformer_forward.9} parent=1 // pred_region
      _
    $region9: #{transformer_forward.9} parent=1 // pred_fallthru
      _
    // Predicated region
    $region10: #{transformer_forward.9} parent=1 // pred_check
      _
    $region11: #{transformer_forward.9} parent=1 // pred_check_branch
      %14 = sbr.rel (0) target = $region13
    $region12: #{transformer_forward.9} parent=1 // pred_region
      _
    $region13: #{transformer_forward.9} parent=1 // pred_fallthru
      _
    %v15 = vld [vmem:[%s0] sm:$0xff]
    %v16 = vld [vmem:[%s0 + $0x8] sm:$0xff]
    %v17 = vld [vmem:[%s1] sm:$0xff]
    %v18 = vld [vmem:[%s1 + $0x8] sm:$0xff]
    %v19 = vld [vmem:[%s1 + $0x10] sm:$0xff]
    %v20 = vld [vmem:[%s1 + $0x18] sm:$0xff]
    %v21 = vld [vmem:[%s2] sm:$0x1]
    %v23 = vlaneseq
    %v24 = vshrl.u32 %v23, 7
    %v25 = vsub.s32 0, %v24
    %v26 = vrot.slane %v21, %v25
    %vm28 = vcmask 261120
    %v30 = vsel %vm28, %v15, 0
    %v33 = vsel %vm28, %v16, 0
    %35 = vmatprep.subr.mxu0 0.0
    %36 = vmatpush1.msra.mxu0 %v17
    %37 = vmatprep.subr.mxu0 0.0
    %38 = vmatpush1.msra.mxu0 %v18
    %39 = vmatprep.subr.mxu0 0.0
    %40 = vmatpush1.msra.mxu0 %v19
    %41 = vmatprep.subr.mxu0 0.0
    %42 = vmatpush1.msra.mxu0 %v20
    %43 = vmatprep.subr.mxu0 0.0
    %44 = vmatpush1.msra.mxu0 0.0
    %45 = vmatprep.subr.mxu0 0.0
    %46 = vmatpush1.msra.mxu0 0.0
    %47 = vmatprep.subr.mxu0 0.0
    %48 = vmatpush1.msra.mxu0 0.0
    %49 = vmatprep.subr.mxu0 0.0
    %50 = vmatpush1.msra.mxu0 0.0
    %51 = vmatprep.subr.mxu0 0.0
    %52 = vmatpush1.msra.mxu0 0.0
    %53 = vmatprep.subr.mxu0 0.0
    %54 = vmatpush1.msra.mxu0 0.0
    %55 = vmatprep.subr.mxu0 0.0
    %56 = vmatpush1.msra.mxu0 0.0
    %57 = vmatprep.subr.mxu0 0.0
    %58 = vmatpush1.msra.mxu0 0.0
    %59 = vmatprep.subr.mxu0 0.0
    %60 = vmatpush1.msra.mxu0 0.0
    %61 = vmatprep.subr.mxu0 0.0
    %62 = vmatpush1.msra.mxu0 0.0
    %63 = vmatprep.subr.mxu0 0.0
    %64 = vmatpush1.msra.mxu0 0.0
    %65 = vmatprep.subr.mxu0 0.0
    %66 = vmatpush1.msra.mxu0 0.0
    %67 = vmatprep.subr.mxu0 0.0
    %68 = vmatpush1.msra.mxu0 0.0
    %69 = vmatprep.subr.mxu0 0.0
    %70 = vmatpush1.msra.mxu0 0.0
    %71 = vmatprep.subr.mxu0 0.0
    %72 = vmatpush1.msra.mxu0 0.0
    %73 = vmatprep.subr.mxu0 0.0
    %74 = vmatpush1.msra.mxu0 0.0
    %75 = vmatprep.subr.mxu0 0.0
    %76 = vmatpush1.msra.mxu0 0.0
    %77 = vmatprep.subr.mxu0 0.0
    %78 = vmatpush1.msra.mxu0 0.0
    %79 = vmatprep.subr.mxu0 0.0
    %80 = vmatpush1.msra.mxu0 0.0
    %81 = vmatprep.subr.mxu0 0.0
    %82 = vmatpush1.msra.mxu0 0.0
    %83 = vmatprep.subr.mxu0 0.0
    %84 = vmatpush1.msra.mxu0 0.0
    %85 = vmatprep.subr.mxu0 0.0
    %86 = vmatpush1.msra.mxu0 0.0
    %87 = vmatprep.subr.mxu0 0.0
    %88 = vmatpush1.msra.mxu0 0.0
    %89 = vmatprep.subr.mxu0 0.0
    %90 = vmatpush1.msra.mxu0 0.0
    %91 = vmatprep.subr.mxu0 0.0
    %92 = vmatpush1.msra.mxu0 0.0
    %93 = vmatprep.subr.mxu0 0.0
    %94 = vmatpush1.msra.mxu0 0.0
    %95 = vmatprep.subr.mxu0 0.0
    %96 = vmatpush1.msra.mxu0 0.0
    %97 = vmatprep.subr.mxu0 0.0
    %98 = vmatpush1.msra.mxu0 0.0
    %99 = vmatprep.mubr.f32.mxu0 0.0
    %100 = vmatmul.mubr.f32.gmra.mrb[0].mxu0 %v30
    %v101 = vpop.f32.mrb[0].mxu0
    %v102 = vadd.f32 %v26, %v101
    %v103 = vpop.f32.mrb[0].mxu0
    %104 = vmatprep.mubr.f32.mxu0 0.0
    %105 = vmatmul.mubr.f32.gmra.mrb[0].mxu0 %v33
    %v106 = vpop.f32.mrb[0].mxu0
    %v107 = vadd.f32 %v26, %v106
    %v108 = vpop.f32.mrb[0].mxu0
    %109 = vdwg.mxu0
    %110 = vst [vmem:[#allocation2] sm:$0xff] %v102
    %111 = vst [vmem:[#allocation2 + $0x8] sm:$0xff] %v107
    // Predicated region
    $region14: #{transformer_forward.9} parent=1 // pred_check
      _
    $region15: #{transformer_forward.9} parent=1 // pred_check_branch
      %113 = sbr.rel (0) target = $region17
    $region16: #{transformer_forward.9} parent=1 // pred_region
      %s115 = ssub.s32 256, 256
      %116 = vsyncadd [#allocation3], %s115
      %s117 = sshll.u32 [#allocation2], 4
      %s118 = int_to_ptr.vmem [resolvable:$true] %s117
      %123 = dma.vmem_to_hbm [thread:$0]  %s118, 256, %s3, [#allocation3], 128, 128, 8
    $region17: #{transformer_forward.9} parent=1 // pred_fallthru
      _
    // Predicated region
    $region18: #{transformer_forward.9} parent=1 // pred_check
      _
    $region19: #{transformer_forward.9} parent=1 // pred_check_branch
      %125 = sbr.rel (0) target = $region21
    $region20: #{transformer_forward.9} parent=1 // pred_region
      %126 = dma.done [#allocation3], 256
    $region21: #{transformer_forward.9} parent=1 // pred_fallthru
      _
    %127 = vsyncpa [#allocation3], 1

// kernel: transformer_forward.5
$region0: #{transformer_forward.5}
  #allocation0 [shape = 'u32[]', space=smem, size = 0x4, offset = 0x4, fixed_abs, tag = 'smem constant byte address 0x4 - core index']
  #allocation1 [shape = 'u32[144,128]{1,0:T(1,128)}', space=vmem, size = 0x12000, scoped, tag = 'internal scratch']
  #allocation2 [shape = 'f32[8,32]{1,0:T(8,128)}', space=vmem, size = 0x1000, scoped, tag = 'scratch operand']
  %s0 = inlined_call_operand.vmem [shape: f32[2,8,32], index: 0, kind: input, shape index: {}, may-alias: {0,1}]
  %s1 = inlined_call_operand.vmem [shape: f32[2,8,32], index: 1, kind: input, shape index: {}, may-alias: {0,1}]
  %s2 = inlined_call_operand.vmem [shape: f32[2,1,8], index: 2, kind: input, shape index: {}]
  %s3 = inlined_call_operand.vmem [shape: f32[32,32], index: 3, kind: input, shape index: {}]
  %s4 = inlined_call_operand.vmem [shape: f32[1,32], index: 4, kind: input, shape index: {}]
  %s5 = inlined_call_operand.vmem [shape: f32[32,32], index: 5, kind: input, shape index: {}]
  %s6 = inlined_call_operand.vmem [shape: f32[1,32], index: 6, kind: input, shape index: {}]
  %s7 = inlined_call_operand.vmem [shape: f32[32,32], index: 7, kind: input, shape index: {}]
  %s8 = inlined_call_operand.vmem [shape: f32[1,32], index: 8, kind: input, shape index: {}]
  %s9 = inlined_call_operand.vmem [shape: f32[1,8,32], index: 9, kind: input, shape index: {}, may-alias: {9,15}]
  %s10 = inlined_call_operand.vmem [shape: f32[1,8,32], index: 10, kind: input, shape index: {}, may-alias: {10,16}]
  %s11 = inlined_call_operand.vmem [shape: f32[32,64], index: 11, kind: input, shape index: {}]
  %s12 = inlined_call_operand.vmem [shape: f32[1,64], index: 12, kind: input, shape index: {}]
  %s13 = inlined_call_operand.vmem [shape: f32[64,32], index: 13, kind: input, shape index: {}]
  %s14 = inlined_call_operand.vmem [shape: f32[1,32], index: 14, kind: input, shape index: {}]
  %s15 = inlined_call_operand.vmem [shape: f32[1,8,32], index: 15, kind: input, shape index: {}, may-alias: {9,15}]
  %s16 = inlined_call_operand.vmem [shape: f32[1,8,32], index: 16, kind: input, shape index: {}, may-alias: {10,16}]
  %s17 = inlined_call_operand.vmem [shape: f32[2,8,32], index: 17, kind: output, shape index: {}]
  %s18 = sld [smem:[#allocation0]]
  $region101: #{transformer_forward.5} parent=0
    _
  %s20 = ssub.s32 1, %s18
  %s21 = scalar_select 0, %s20, %s18
  loop: start=0, step=1, limit=4
  $region2: #{transformer_forward.5} parent=0 // loop_pre_header
    _
  $region3: #{transformer_forward.5} parent=0 // loop_header
    %s23 = sphi 0, %s27
    %p24 = scmp.ge.s32.totalorder %s23, 4
    %s33 = sphi 0, %s35
    %s36 = sphi 0, %s33
    %s37 = sphi 0, %s36
    %s53 = sphi 0, %s37
    %s59 = sphi 0, %s61
    %s62 = sphi 0, %s59
    %s63 = sphi 0, %s62
    %s79 = sphi 0, %s63
    %s85 = sphi 0, %s87
    %s88 = sphi 0, %s85
    %s89 = sphi 0, %s88
    %s105 = sphi 0, %s89
    %s109 = sphi 0, %s109
    %s111 = sphi 0, %s109
    %s112 = sphi 0, %s111
    %s126 = sphi 0, %s112
    %s130 = sphi 0, %s130
    %s132 = sphi 0, %s130
    %s133 = sphi 0, %s132
    %s147 = sphi 0, %s133
    %s151 = sphi 0, %s151
    %s153 = sphi 0, %s151
    %s154 = sphi 0, %s153
    %s168 = sphi 0, %s154
    %s172 = sphi 0, %s172
    %s174 = sphi 0, %s172
    %s175 = sphi 0, %s174
    %s189 = sphi 0, %s175
    %s193 = sphi 0, %s193
    %s195 = sphi 0, %s193
    %s196 = sphi 0, %s195
    %s210 = sphi 0, %s196
    %s214 = sphi 0, %s214
    %s216 = sphi 0, %s214
    %s217 = sphi 0, %s216
    %s231 = sphi 0, %s217
    %s235 = sphi 0, %s235
    %s237 = sphi 0, %s235
    %s238 = sphi 0, %s237
    %s252 = sphi 0, %s238
    %s256 = sphi 0, %s256
    %s258 = sphi 0, %s256
    %s259 = sphi 0, %s258
    %s273 = sphi 0, %s259
    %s277 = sphi 0, %s277
    %s279 = sphi 0, %s277
    %s280 = sphi 0, %s279
    %s294 = sphi 0, %s280
    %s298 = sphi 0, %s298
    %s300 = sphi 0, %s298
    %s301 = sphi 0, %s300
    %s315 = sphi 0, %s301
    %s319 = sphi 0, %s319
    %s321 = sphi 0, %s319
    %s322 = sphi 0, %s321
    %s336 = sphi 0, %s322
    %s340 = sphi 0, %s340
    %s342 = sphi 0, %s340
    %s343 = sphi 0, %s342
    %s357 = sphi 0, %s343
    %s361 = sphi 0, %s361
    %s363 = sphi 0, %s361
    %s364 = sphi 0, %s363
    %s378 = sphi 0, %s364
    %s382 = sphi 0, %s382
    %s384 = sphi 0, %s382
    %s385 = sphi 0, %s384
    %s399 = sphi 0, %s385
    %s405 = sphi 0, %s407
    %s408 = sphi 0, %s405
    %s409 = sphi 0, %s408
    %s425 = sphi 0, %s409
  $region4: #{transformer_forward.5} parent=0 // loop_header_branch
    %26 = sbr.rel (%p24) target = $region8
  $region5: #{transformer_forward.5} parent=0 // loop_body
    %s28 = ssub.s32 %s23, 1
    %s29 = ssub.s32 %s23, 2
    %s30 = sadd.s32 %s23, 1
    %s31 = ssub.s32 %s23, %s30
    %p32 = scmp.eq.s32.totalorder %s31, 0
    %s34 = sadd.s32 %s33, 1
    %s35 = scalar_select %p32, %s33, %s34
    %p38 = pneg %p32
    %p39 = scmp.eq.s32.totalorder %s23, 1
    %p40 = por %p38, %p39
    %p41 = scmp.ne.s32.totalorder %s33, %s36
    %p42 = scmp.eq.s32.totalorder %s23, 0
    %p43 = por %p41, %p42
    %p44 = scmp.ne.s32.totalorder %s33, %s36
    %p45 = scmp.eq.s32.totalorder %s28, 1
    %p46 = por %p44, %p45
    %p47 = scmp.ne.s32.totalorder %s36, %s37
    %p48 = scmp.eq.s32.totalorder %s28, 0
    %p49 = por %p47, %p48
    %p50 = scmp.ne.s32.totalorder %s36, %s37
    %p51 = scmp.eq.s32.totalorder %s29, 1
    %p52 = por %p50, %p51
    %p54 = scmp.ne.s32.totalorder %s37, %s53
    %p55 = scmp.eq.s32.totalorder %s29, 0
    %p56 = por %p54, %p55
    %s57 = ssub.s32 %s23, %s30
    %p58 = scmp.eq.s32.totalorder %s57, 0
    %s60 = sadd.s32 %s59, 1
    %s61 = scalar_select %p58, %s59, %s60
    %p64 = pneg %p58
    %p65 = scmp.eq.s32.totalorder %s23, 1
    %p66 = por %p64, %p65
    %p67 = scmp.ne.s32.totalorder %s59, %s62
    %p68 = scmp.eq.s32.totalorder %s23, 0
    %p69 = por %p67, %p68
    %p70 = scmp.ne.s32.totalorder %s59, %s62
    %p71 = scmp.eq.s32.totalorder %s28, 1
    %p72 = por %p70, %p71
    %p73 = scmp.ne.s32.totalorder %s62, %s63
    %p74 = scmp.eq.s32.totalorder %s28, 0
    %p75 = por %p73, %p74
    %p76 = scmp.ne.s32.totalorder %s62, %s63
    %p77 = scmp.eq.s32.totalorder %s29, 1
    %p78 = por %p76, %p77
    %p80 = scmp.ne.s32.totalorder %s63, %s79
    %p81 = scmp.eq.s32.totalorder %s29, 0
    %p82 = por %p80, %p81
    %s83 = ssub.s32 %s23, %s30
    %p84 = scmp.eq.s32.totalorder %s83, 0
    %s86 = sadd.s32 %s85, 1
    %s87 = scalar_select %p84, %s85, %s86
    %p90 = pneg %p84
    %p91 = scmp.eq.s32.totalorder %s23, 1
    %p92 = por %p90, %p91
    %p93 = scmp.ne.s32.totalorder %s85, %s88
    %p94 = scmp.eq.s32.totalorder %s23, 0
    %p95 = por %p93, %p94
    %p96 = scmp.ne.s32.totalorder %s85, %s88
    %p97 = scmp.eq.s32.totalorder %s28, 1
    %p98 = por %p96, %p97
    %p99 = scmp.ne.s32.totalorder %s88, %s89
    %p100 = scmp.eq.s32.totalorder %s28, 0
    %p101 = por %p99, %p100
    %p102 = scmp.ne.s32.totalorder %s88, %s89
    %p103 = scmp.eq.s32.totalorder %s29, 1
    %p104 = por %p102, %p103
    %p106 = scmp.ne.s32.totalorder %s89, %s105
    %p107 = scmp.eq.s32.totalorder %s29, 0
    %p108 = por %p106, %p107
    %s110 = sadd.s32 %s109, 1
    %p113 = scmp.eq.s32.totalorder %s23, 1
    %p114 = scmp.ne.s32.totalorder %s109, %s111
    %p115 = scmp.eq.s32.totalorder %s23, 0
    %p116 = por %p114, %p115
    %p117 = scmp.ne.s32.totalorder %s109, %s111
    %p118 = scmp.eq.s32.totalorder %s28, 1
    %p119 = por %p117, %p118
    %p120 = scmp.ne.s32.totalorder %s111, %s112
    %p121 = scmp.eq.s32.totalorder %s28, 0
    %p122 = por %p120, %p121
    %p123 = scmp.ne.s32.totalorder %s111, %s112
    %p124 = scmp.eq.s32.totalorder %s29, 1
    %p125 = por %p123, %p124
    %p127 = scmp.ne.s32.totalorder %s112, %s126
    %p128 = scmp.eq.s32.totalorder %s29, 0
    %p129 = por %p127, %p128
    %s131 = sadd.s32 %s130, 1
    %p134 = scmp.eq.s32.totalorder %s23, 1
    %p135 = scmp.ne.s32.totalorder %s130, %s132
    %p136 = scmp.eq.s32.totalorder %s23, 0
    %p137 = por %p135, %p136
    %p138 = scmp.ne.s32.totalorder %s130, %s132
    %p139 = scmp.eq.s32.totalorder %s28, 1
    %p140 = por %p138, %p139
    %p141 = scmp.ne.s32.totalorder %s132, %s133
    %p142 = scmp.eq.s32.totalorder %s28, 0
    %p143 = por %p141, %p142
    %p144 = scmp.ne.s32.totalorder %s132, %s133
    %p145 = scmp.eq.s32.totalorder %s29, 1
    %p146 = por %p144, %p145
    %p148 = scmp.ne.s32.totalorder %s133, %s147
    %p149 = scmp.eq.s32.totalorder %s29, 0
    %p150 = por %p148, %p149
    %s152 = sadd.s32 %s151, 1
    %p155 = scmp.eq.s32.totalorder %s23, 1
    %p156 = scmp.ne.s32.totalorder %s151, %s153
    %p157 = scmp.eq.s32.totalorder %s23, 0
    %p158 = por %p156, %p157
    %p159 = scmp.ne.s32.totalorder %s151, %s153
    %p160 = scmp.eq.s32.totalorder %s28, 1
    %p161 = por %p159, %p160
    %p162 = scmp.ne.s32.totalorder %s153, %s154
    %p163 = scmp.eq.s32.totalorder %s28, 0
    %p164 = por %p162, %p163
    %p165 = scmp.ne.s32.totalorder %s153, %s154
    %p166 = scmp.eq.s32.totalorder %s29, 1
    %p167 = por %p165, %p166
    %p169 = scmp.ne.s32.totalorder %s154, %s168
    %p170 = scmp.eq.s32.totalorder %s29, 0
    %p171 = por %p169, %p170
    %s173 = sadd.s32 %s172, 1
    %p176 = scmp.eq.s32.totalorder %s23, 1
    %p177 = scmp.ne.s32.totalorder %s172, %s174
    %p178 = scmp.eq.s32.totalorder %s23, 0
    %p179 = por %p177, %p178
    %p180 = scmp.ne.s32.totalorder %s172, %s174
    %p181 = scmp.eq.s32.totalorder %s28, 1
    %p182 = por %p180, %p181
    %p183 = scmp.ne.s32.totalorder %s174, %s175
    %p184 = scmp.eq.s32.totalorder %s28, 0
    %p185 = por %p183, %p184
    %p186 = scmp.ne.s32.totalorder %s174, %s175
    %p187 = scmp.eq.s32.totalorder %s29, 1
    %p188 = por %p186, %p187
    %p190 = scmp.ne.s32.totalorder %s175, %s189
    %p191 = scmp.eq.s32.totalorder %s29, 0
    %p192 = por %p190, %p191
    %s194 = sadd.s32 %s193, 1
    %p197 = scmp.eq.s32.totalorder %s23, 1
    %p198 = scmp.ne.s32.totalorder %s193, %s195
    %p199 = scmp.eq.s32.totalorder %s23, 0
    %p200 = por %p198, %p199
    %p201 = scmp.ne.s32.totalorder %s193, %s195
    %p202 = scmp.eq.s32.totalorder %s28, 1
    %p203 = por %p201, %p202
    %p204 = scmp.ne.s32.totalorder %s195, %s196
    %p205 = scmp.eq.s32.totalorder %s28, 0
    %p206 = por %p204, %p205
    %p207 = scmp.ne.s32.totalorder %s195, %s196
    %p208 = scmp.eq.s32.totalorder %s29, 1
    %p209 = por %p207, %p208
    %p211 = scmp.ne.s32.totalorder %s196, %s210
    %p212 = scmp.eq.s32.totalorder %s29, 0
    %p213 = por %p211, %p212
    %s215 = sadd.s32 %s214, 1
    %p218 = scmp.eq.s32.totalorder %s23, 1
    %p219 = scmp.ne.s32.totalorder %s214, %s216
    %p220 = scmp.eq.s32.totalorder %s23, 0
    %p221 = por %p219, %p220
    %p222 = scmp.ne.s32.totalorder %s214, %s216
    %p223 = scmp.eq.s32.totalorder %s28, 1
    %p224 = por %p222, %p223
    %p225 = scmp.ne.s32.totalorder %s216, %s217
    %p226 = scmp.eq.s32.totalorder %s28, 0
    %p227 = por %p225, %p226
    %p228 = scmp.ne.s32.totalorder %s216, %s217
    %p229 = scmp.eq.s32.totalorder %s29, 1
    %p230 = por %p228, %p229
    %p232 = scmp.ne.s32.totalorder %s217, %s231
    %p233 = scmp.eq.s32.totalorder %s29, 0
    %p234 = por %p232, %p233
    %s236 = sadd.s32 %s235, 1
    %p239 = scmp.eq.s32.totalorder %s23, 1
    %p240 = scmp.ne.s32.totalorder %s235, %s237
    %p241 = scmp.eq.s32.totalorder %s23, 0
    %p242 = por %p240, %p241
    %p243 = scmp.ne.s32.totalorder %s235, %s237
    %p244 = scmp.eq.s32.totalorder %s28, 1
    %p245 = por %p243, %p244
    %p246 = scmp.ne.s32.totalorder %s237, %s238
    %p247 = scmp.eq.s32.totalorder %s28, 0
    %p248 = por %p246, %p247
    %p249 = scmp.ne.s32.totalorder %s237, %s238
    %p250 = scmp.eq.s32.totalorder %s29, 1
    %p251 = por %p249, %p250
    %p253 = scmp.ne.s32.totalorder %s238, %s252
    %p254 = scmp.eq.s32.totalorder %s29, 0
    %p255 = por %p253, %p254
    %s257 = sadd.s32 %s256, 1
    %p260 = scmp.eq.s32.totalorder %s23, 1
    %p261 = scmp.ne.s32.totalorder %s256, %s258
    %p262 = scmp.eq.s32.totalorder %s23, 0
    %p263 = por %p261, %p262
    %p264 = scmp.ne.s32.totalorder %s256, %s258
    %p265 = scmp.eq.s32.totalorder %s28, 1
    %p266 = por %p264, %p265
    %p267 = scmp.ne.s32.totalorder %s258, %s259
    %p268 = scmp.eq.s32.totalorder %s28, 0
    %p269 = por %p267, %p268
    %p270 = scmp.ne.s32.totalorder %s258, %s259
    %p271 = scmp.eq.s32.totalorder %s29, 1
    %p272 = por %p270, %p271
    %p274 = scmp.ne.s32.totalorder %s259, %s273
    %p275 = scmp.eq.s32.totalorder %s29, 0
    %p276 = por %p274, %p275
    %s278 = sadd.s32 %s277, 1
    %p281 = scmp.eq.s32.totalorder %s23, 1
    %p282 = scmp.ne.s32.totalorder %s277, %s279
    %p283 = scmp.eq.s32.totalorder %s23, 0
    %p284 = por %p282, %p283
    %p285 = scmp.ne.s32.totalorder %s277, %s279
    %p286 = scmp.eq.s32.totalorder %s28, 1
    %p287 = por %p285, %p286
    %p288 = scmp.ne.s32.totalorder %s279, %s280
    %p289 = scmp.eq.s32.totalorder %s28, 0
    %p290 = por %p288, %p289
    %p291 = scmp.ne.s32.totalorder %s279, %s280
    %p292 = scmp.eq.s32.totalorder %s29, 1
    %p293 = por %p291, %p292
    %p295 = scmp.ne.s32.totalorder %s280, %s294
    %p296 = scmp.eq.s32.totalorder %s29, 0
    %p297 = por %p295, %p296
    %s299 = sadd.s32 %s298, 1
    %p302 = scmp.eq.s32.totalorder %s23, 1
    %p303 = scmp.ne.s32.totalorder %s298, %s300
    %p304 = scmp.eq.s32.totalorder %s23, 0
    %p305 = por %p303, %p304
    %p306 = scmp.ne.s32.totalorder %s298, %s300
    %p307 = scmp.eq.s32.totalorder %s28, 1
    %p308 = por %p306, %p307
    %p309 = scmp.ne.s32.totalorder %s300, %s301
    %p310 = scmp.eq.s32.totalorder %s28, 0
    %p311 = por %p309, %p310
    %p312 = scmp.ne.s32.totalorder %s300, %s301
    %p313 = scmp.eq.s32.totalorder %s29, 1
    %p314 = por %p312, %p313
    %p316 = scmp.ne.s32.totalorder %s301, %s315
    %p317 = scmp.eq.s32.totalorder %s29, 0
    %p318 = por %p316, %p317
    %s320 = sadd.s32 %s319, 1
    %p323 = scmp.eq.s32.totalorder %s23, 1
    %p324 = scmp.ne.s32.totalorder %s319, %s321
    %p325 = scmp.eq.s32.totalorder %s23, 0
    %p326 = por %p324, %p325
    %p327 = scmp.ne.s32.totalorder %s319, %s321
    %p328 = scmp.eq.s32.totalorder %s28, 1
    %p329 = por %p327, %p328
    %p330 = scmp.ne.s32.totalorder %s321, %s322
    %p331 = scmp.eq.s32.totalorder %s28, 0
    %p332 = por %p330, %p331
    %p333 = scmp.ne.s32.totalorder %s321, %s322
    %p334 = scmp.eq.s32.totalorder %s29, 1
    %p335 = por %p333, %p334
    %p337 = scmp.ne.s32.totalorder %s322, %s336
    %p338 = scmp.eq.s32.totalorder %s29, 0
    %p339 = por %p337, %p338
    %s341 = sadd.s32 %s340, 1
    %p344 = scmp.eq.s32.totalorder %s23, 1
    %p345 = scmp.ne.s32.totalorder %s340, %s342
    %p346 = scmp.eq.s32.totalorder %s23, 0
    %p347 = por %p345, %p346
    %p348 = scmp.ne.s32.totalorder %s340, %s342
    %p349 = scmp.eq.s32.totalorder %s28, 1
    %p350 = por %p348, %p349
    %p351 = scmp.ne.s32.totalorder %s342, %s343
    %p352 = scmp.eq.s32.totalorder %s28, 0
    %p353 = por %p351, %p352
    %p354 = scmp.ne.s32.totalorder %s342, %s343
    %p355 = scmp.eq.s32.totalorder %s29, 1
    %p356 = por %p354, %p355
    %p358 = scmp.ne.s32.totalorder %s343, %s357
    %p359 = scmp.eq.s32.totalorder %s29, 0
    %p360 = por %p358, %p359
    %s362 = sadd.s32 %s361, 1
    %p365 = scmp.eq.s32.totalorder %s23, 1
    %p366 = scmp.ne.s32.totalorder %s361, %s363
    %p367 = scmp.eq.s32.totalorder %s23, 0
    %p368 = por %p366, %p367
    %p369 = scmp.ne.s32.totalorder %s361, %s363
    %p370 = scmp.eq.s32.totalorder %s28, 1
    %p371 = por %p369, %p370
    %p372 = scmp.ne.s32.totalorder %s363, %s364
    %p373 = scmp.eq.s32.totalorder %s28, 0
    %p374 = por %p372, %p373
    %p375 = scmp.ne.s32.totalorder %s363, %s364
    %p376 = scmp.eq.s32.totalorder %s29, 1
    %p377 = por %p375, %p376
    %p379 = scmp.ne.s32.totalorder %s364, %s378
    %p380 = scmp.eq.s32.totalorder %s29, 0
    %p381 = por %p379, %p380
    %s383 = sadd.s32 %s382, 1
    %p386 = scmp.eq.s32.totalorder %s23, 1
    %p387 = scmp.ne.s32.totalorder %s382, %s384
    %p388 = scmp.eq.s32.totalorder %s23, 0
    %p389 = por %p387, %p388
    %p390 = scmp.ne.s32.totalorder %s382, %s384
    %p391 = scmp.eq.s32.totalorder %s28, 1
    %p392 = por %p390, %p391
    %p393 = scmp.ne.s32.totalorder %s384, %s385
    %p394 = scmp.eq.s32.totalorder %s28, 0
    %p395 = por %p393, %p394
    %p396 = scmp.ne.s32.totalorder %s384, %s385
    %p397 = scmp.eq.s32.totalorder %s29, 1
    %p398 = por %p396, %p397
    %p400 = scmp.ne.s32.totalorder %s385, %s399
    %p401 = scmp.eq.s32.totalorder %s29, 0
    %p402 = por %p400, %p401
    %s403 = ssub.s32 %s23, %s30
    %p404 = scmp.eq.s32.totalorder %s403, 0
    %s406 = sadd.s32 %s405, 1
    %s407 = scalar_select %p404, %s405, %s406
    %p410 = pneg %p404
    %p411 = scmp.eq.s32.totalorder %s23, 1
    %p412 = por %p410, %p411
    %p413 = scmp.ne.s32.totalorder %s405, %s408
    %p414 = scmp.eq.s32.totalorder %s23, 0
    %p415 = por %p413, %p414
    %p416 = scmp.ne.s32.totalorder %s405, %s408
    %p417 = scmp.eq.s32.totalorder %s28, 1
    %p418 = por %p416, %p417
    %p419 = scmp.ne.s32.totalorder %s408, %s409
    %p420 = scmp.eq.s32.totalorder %s28, 0
    %p421 = por %p419, %p420
    %p422 = scmp.ne.s32.totalorder %s408, %s409
    %p423 = scmp.eq.s32.totalorder %s29, 1
    %p424 = por %p422, %p423
    %p426 = scmp.ne.s32.totalorder %s409, %s425
    %p427 = scmp.eq.s32.totalorder %s29, 0
    %p428 = por %p426, %p427
    %p429 = scmp.le.s32.totalorder 1, %s23
    %p430 = scmp.lt.s32.totalorder %s23, 3
    %p431 = pnand %p429, %p430
    %p432 = pneg %p431
    // Predicated region
    $region9: #{transformer_forward.5} parent=5 // pred_check
      _
    $region10: #{transformer_forward.5} parent=5 // pred_check_branch
      %434 = sbr.rel (%p431) target = $region12
    $region11: #{transformer_forward.5} parent=5 // pred_region
      %s435 = ssub.s32 %s23, 1
      // Predicated region
      $region13: #{transformer_forward.5} parent=11 // pred_check
        %p436 = pneg %p122
      $region14: #{transformer_forward.5} parent=11 // pred_check_branch
        %438 = sbr.rel (%p436) target = $region16
      $region15: #{transformer_forward.5} parent=11 // pred_region
        _
      $region16: #{transformer_forward.5} parent=11 // pred_fallthru
        _
      // Predicated region
      $region17: #{transformer_forward.5} parent=11 // pred_check
        %p439 = pneg %p143
      $region18: #{transformer_forward.5} parent=11 // pred_check_branch
        %441 = sbr.rel (%p439) target = $region20
      $region19: #{transformer_forward.5} parent=11 // pred_region
        _
      $region20: #{transformer_forward.5} parent=11 // pred_fallthru
        _
      // Predicated region
      $region21: #{transformer_forward.5} parent=11 // pred_check
        %p442 = pneg %p164
      $region22: #{transformer_forward.5} parent=11 // pred_check_branch
        %444 = sbr.rel (%p442) target = $region24
      $region23: #{transformer_forward.5} parent=11 // pred_region
        _
      $region24: #{transformer_forward.5} parent=11 // pred_fallthru
        _
      // Predicated region
      $region25: #{transformer_forward.5} parent=11 // pred_check
        %p445 = pneg %p185
      $region26: #{transformer_forward.5} parent=11 // pred_check_branch
        %447 = sbr.rel (%p445) target = $region28
      $region27: #{transformer_forward.5} parent=11 // pred_region
        _
      $region28: #{transformer_forward.5} parent=11 // pred_fallthru
        _
      // Predicated region
      $region29: #{transformer_forward.5} parent=11 // pred_check
        %p448 = pneg %p206
      $region30: #{transformer_forward.5} parent=11 // pred_check_branch
        %450 = sbr.rel (%p448) target = $region32
      $region31: #{transformer_forward.5} parent=11 // pred_region
        _
      $region32: #{transformer_forward.5} parent=11 // pred_fallthru
        _
      // Predicated region
      $region33: #{transformer_forward.5} parent=11 // pred_check
        %p451 = pneg %p227
      $region34: #{transformer_forward.5} parent=11 // pred_check_branch
        %453 = sbr.rel (%p451) target = $region36
      $region35: #{transformer_forward.5} parent=11 // pred_region
        _
      $region36: #{transformer_forward.5} parent=11 // pred_fallthru
        _
      // Predicated region
      $region37: #{transformer_forward.5} parent=11 // pred_check
        %p454 = pneg %p248
      $region38: #{transformer_forward.5} parent=11 // pred_check_branch
        %456 = sbr.rel (%p454) target = $region40
      $region39: #{transformer_forward.5} parent=11 // pred_region
        _
      $region40: #{transformer_forward.5} parent=11 // pred_fallthru
        _
      // Predicated region
      $region41: #{transformer_forward.5} parent=11 // pred_check
        %p457 = pneg %p269
      $region42: #{transformer_forward.5} parent=11 // pred_check_branch
        %459 = sbr.rel (%p457) target = $region44
      $region43: #{transformer_forward.5} parent=11 // pred_region
        _
      $region44: #{transformer_forward.5} parent=11 // pred_fallthru
        _
      // Predicated region
      $region45: #{transformer_forward.5} parent=11 // pred_check
        %p460 = pneg %p290
      $region46: #{transformer_forward.5} parent=11 // pred_check_branch
        %462 = sbr.rel (%p460) target = $region48
      $region47: #{transformer_forward.5} parent=11 // pred_region
        _
      $region48: #{transformer_forward.5} parent=11 // pred_fallthru
        _
      // Predicated region
      $region49: #{transformer_forward.5} parent=11 // pred_check
        %p463 = pneg %p311
      $region50: #{transformer_forward.5} parent=11 // pred_check_branch
        %465 = sbr.rel (%p463) target = $region52
      $region51: #{transformer_forward.5} parent=11 // pred_region
        _
      $region52: #{transformer_forward.5} parent=11 // pred_fallthru
        _
      // Predicated region
      $region53: #{transformer_forward.5} parent=11 // pred_check
        %p466 = pneg %p332
      $region54: #{transformer_forward.5} parent=11 // pred_check_branch
        %468 = sbr.rel (%p466) target = $region56
      $region55: #{transformer_forward.5} parent=11 // pred_region
        _
      $region56: #{transformer_forward.5} parent=11 // pred_fallthru
        _
      // Predicated region
      $region57: #{transformer_forward.5} parent=11 // pred_check
        %p469 = pneg %p353
      $region58: #{transformer_forward.5} parent=11 // pred_check_branch
        %471 = sbr.rel (%p469) target = $region60
      $region59: #{transformer_forward.5} parent=11 // pred_region
        _
      $region60: #{transformer_forward.5} parent=11 // pred_fallthru
        _
      // Predicated region
      $region61: #{transformer_forward.5} parent=11 // pred_check
        %p472 = pneg %p374
      $region62: #{transformer_forward.5} parent=11 // pred_check_branch
        %474 = sbr.rel (%p472) target = $region64
      $region63: #{transformer_forward.5} parent=11 // pred_region
        _
      $region64: #{transformer_forward.5} parent=11 // pred_fallthru
        _
      // Predicated region
      $region65: #{transformer_forward.5} parent=11 // pred_check
        %p475 = pneg %p395
      $region66: #{transformer_forward.5} parent=11 // pred_check_branch
        %477 = sbr.rel (%p475) target = $region68
      $region67: #{transformer_forward.5} parent=11 // pred_region
        _
      $region68: #{transformer_forward.5} parent=11 // pred_fallthru
        _
    $region12: #{transformer_forward.5} parent=5 // pred_fallthru
      _
    %p478 = scmp.lt.s32.totalorder %s23, 2
    // Predicated region
    $region69: #{transformer_forward.5} parent=5 // pred_check
      %p479 = pneg %p478
    $region70: #{transformer_forward.5} parent=5 // pred_check_branch
      %481 = sbr.rel (%p479) target = $region72
    $region71: #{transformer_forward.5} parent=5 // pred_region
      // Predicated region
      $region73: #{transformer_forward.5} parent=71 // pred_check
        %p482 = pneg %p43
      $region74: #{transformer_forward.5} parent=71 // pred_check_branch
        %484 = sbr.rel (%p482) target = $region76
      $region75: #{transformer_forward.5} parent=71 // pred_region
        %p485 = scmp.lt.s32.totalorder %s23, 1
        %s486 = scalar_select %p485, %s23, 1
        %s487 = smul.addr %s486, 8
        %s488 = scalar_lea.vmem %s0, %s487
      $region76: #{transformer_forward.5} parent=71 // pred_fallthru
        _
      // Predicated region
      $region77: #{transformer_forward.5} parent=71 // pred_check
        %p489 = pneg %p69
      $region78: #{transformer_forward.5} parent=71 // pred_check_branch
        %491 = sbr.rel (%p489) target = $region80
      $region79: #{transformer_forward.5} parent=71 // pred_region
        %p492 = scmp.lt.s32.totalorder %s23, 1
        %s493 = scalar_select %p492, %s23, 1
        %s494 = smul.addr %s493, 8
        %s495 = scalar_lea.vmem %s1, %s494
      $region80: #{transformer_forward.5} parent=71 // pred_fallthru
        _
      // Predicated region
      $region81: #{transformer_forward.5} parent=71 // pred_check
        %p496 = pneg %p95
      $region82: #{transformer_forward.5} parent=71 // pred_check_branch
        %498 = sbr.rel (%p496) target = $region84
      $region83: #{transformer_forward.5} parent=71 // pred_region
        %p499 = scmp.lt.s32.totalorder %s23, 1
        %s500 = scalar_select %p499, %s23, 1
        %s501 = scalar_lea.vmem %s2, %s500
      $region84: #{transformer_forward.5} parent=71 // pred_fallthru
        _
    $region72: #{transformer_forward.5} parent=5 // pred_fallthru
      _
    %p502 = scmp.le.s32.totalorder 1, %s23
    %p503 = scmp.lt.s32.totalorder %s23, 3
    %p504 = pnand %p502, %p503
    %p505 = pneg %p504
    // Predicated region
    $region85: #{transformer_forward.5} parent=5 // pred_check
      _
    $region86: #{transformer_forward.5} parent=5 // pred_check_branch
      %507 = sbr.rel (%p504) target = $region88
    $region87: #{transformer_forward.5} parent=5 // pred_region
      %s508 = ssub.s32 %s23, 1
      %p509 = scmp.lt.s32.totalorder %s28, 1
      %s510 = scalar_select %p509, %s28, 1
      %s511 = smul.addr %s510, 8
      %s512 = scalar_lea.vmem %s0, %s511
      %p513 = pneg %p49
      %p514 = pneg %p46
      %p515 = scmp.lt.s32.totalorder %s28, 1
      %s516 = scalar_select %p515, %s28, 1
      %s517 = smul.addr %s516, 8
      %s518 = scalar_lea.vmem %s1, %s517
      %p519 = pneg %p75
      %p520 = pneg %p72
      %p521 = scmp.lt.s32.totalorder %s28, 1
      %s522 = scalar_select %p521, %s28, 1
      %s523 = scalar_lea.vmem %s2, %s522
      %p524 = pneg %p101
      %p525 = pneg %p98
      %p526 = pneg %p122
      %p527 = pneg %p119
      %p528 = pneg %p143
      %p529 = pneg %p140
      %p530 = pneg %p164
      %p531 = pneg %p161
      %p532 = pneg %p185
      %p533 = pneg %p182
      %p534 = pneg %p206
      %p535 = pneg %p203
      %p536 = pneg %p227
      %p537 = pneg %p224
      %p538 = pneg %p248
      %p539 = pneg %p245
      %p540 = pneg %p269
      %p541 = pneg %p266
      %p542 = pneg %p290
      %p543 = pneg %p287
      %p544 = pneg %p311
      %p545 = pneg %p308
      %p546 = pneg %p332
      %p547 = pneg %p329
      %p548 = pneg %p353
      %p549 = pneg %p350
      %p550 = pneg %p374
      %p551 = pneg %p371
      %p552 = pneg %p395
      %p553 = pneg %p392
      %p554 = pneg %p421
      %p555 = pneg %p418
      %p556 = scmp.lt.s32.totalorder %s28, 1
      %s557 = scalar_select %p556, %s28, 1
      %s558 = smul.addr %s557, 8
      %s559 = scalar_lea.vmem %s17, %s558
      %p560 = scmp.lt.s32.totalorder %s28, 1
      %s561 = scalar_select %p560, %s28, 1
      %s562 = smul.addr %s561, 8
      %s563 = scalar_lea.vmem %s0, %s562
      %p564 = scmp.lt.s32.totalorder %s28, 1
      %s565 = scalar_select %p564, %s28, 1
      %s566 = smul.addr %s565, 8
      %s567 = scalar_lea.vmem %s1, %s566
      %p568 = scmp.lt.s32.totalorder %s28, 1
      %s569 = scalar_select %p568, %s28, 1
      %s570 = scalar_lea.vmem %s2, %s569
      %p571 = scmp.lt.s32.totalorder %s28, 1
      %s572 = scalar_select %p571, %s28, 1
      %s573 = smul.addr %s572, 8
      %s574 = scalar_lea.vmem %s17, %s573
      %v575 = vld [vmem:[%s563] sm:$0xff]
      %v576 = vld [vmem:[%s567] sm:$0xff]
      %v577 = vld [vmem:[%s570] sm:$0x1]
      %vm578 = vcmp.gt.f32.partialorder %v577, 0.0
      %v579 = vld [vmem:[%s3] sm:$0xff]
      %v580 = vld [vmem:[%s3 + $0x8] sm:$0xff]
      %v581 = vld [vmem:[%s3 + $0x10] sm:$0xff]
      %v582 = vld [vmem:[%s3 + $0x18] sm:$0xff]
      %v583 = vld [vmem:[%s4] sm:$0x1]
      %v585 = vlaneseq
      %v586 = vshrl.u32 %v585, 7
      %v587 = vsub.s32 0, %v586
      %v588 = vrot.slane %v583, %v587
      %vm590 = vcmask 261120
      %v592 = vsel %vm590, %v575, 0
      %594 = vmatprep.subr.mxu0 0.0
      %595 = vmatpush1.msra.mxu0 %v579
      %596 = vmatprep.subr.mxu0 0.0
      %597 = vmatpush1.msra.mxu0 %v580
      %598 = vmatprep.subr.mxu0 0.0
      %599 = vmatpush1.msra.mxu0 %v581
      %600 = vmatprep.subr.mxu0 0.0
      %601 = vmatpush1.msra.mxu0 %v582
      %602 = vmatprep.subr.mxu0 0.0
      %603 = vmatpush1.msra.mxu0 0.0
      %604 = vmatprep.subr.mxu0 0.0
      %605 = vmatpush1.msra.mxu0 0.0
      %606 = vmatprep.subr.mxu0 0.0
      %607 = vmatpush1.msra.mxu0 0.0
      %608 = vmatprep.subr.mxu0 0.0
      %609 = vmatpush1.msra.mxu0 0.0
      %610 = vmatprep.subr.mxu0 0.0
      %611 = vmatpush1.msra.mxu0 0.0
      %612 = vmatprep.subr.mxu0 0.0
      %613 = vmatpush1.msra.mxu0 0.0
      %614 = vmatprep.subr.mxu0 0.0
      %615 = vmatpush1.msra.mxu0 0.0
      %616 = vmatprep.subr.mxu0 0.0
      %617 = vmatpush1.msra.mxu0 0.0
      %618 = vmatprep.subr.mxu0 0.0
      %619 = vmatpush1.msra.mxu0 0.0
      %620 = vmatprep.subr.mxu0 0.0
      %621 = vmatpush1.msra.mxu0 0.0
      %622 = vmatprep.subr.mxu0 0.0
      %623 = vmatpush1.msra.mxu0 0.0
      %624 = vmatprep.subr.mxu0 0.0
      %625 = vmatpush1.msra.mxu0 0.0
      %626 = vmatprep.subr.mxu0 0.0
      %627 = vmatpush1.msra.mxu0 0.0
      %628 = vmatprep.subr.mxu0 0.0
      %629 = vmatpush1.msra.mxu0 0.0
      %630 = vmatprep.subr.mxu0 0.0
      %631 = vmatpush1.msra.mxu0 0.0
      %632 = vmatprep.subr.mxu0 0.0
      %633 = vmatpush1.msra.mxu0 0.0
      %634 = vmatprep.subr.mxu0 0.0
      %635 = vmatpush1.msra.mxu0 0.0
      %636 = vmatprep.subr.mxu0 0.0
      %637 = vmatpush1.msra.mxu0 0.0
      %638 = vmatprep.subr.mxu0 0.0
      %639 = vmatpush1.msra.mxu0 0.0
      %640 = vmatprep.subr.mxu0 0.0
      %641 = vmatpush1.msra.mxu0 0.0
      %642 = vmatprep.subr.mxu0 0.0
      %643 = vmatpush1.msra.mxu0 0.0
      %644 = vmatprep.subr.mxu0 0.0
      %645 = vmatpush1.msra.mxu0 0.0
      %646 = vmatprep.subr.mxu0 0.0
      %647 = vmatpush1.msra.mxu0 0.0
      %648 = vmatprep.subr.mxu0 0.0
      %649 = vmatpush1.msra.mxu0 0.0
      %650 = vmatprep.subr.mxu0 0.0
      %651 = vmatpush1.msra.mxu0 0.0
      %652 = vmatprep.subr.mxu0 0.0
      %653 = vmatpush1.msra.mxu0 0.0
      %654 = vmatprep.subr.mxu0 0.0
      %655 = vmatpush1.msra.mxu0 0.0
      %656 = vmatprep.subr.mxu0 0.0
      %657 = vmatpush1.msra.mxu0 0.0
      %658 = vmatprep.mubr.f32.mxu0 0.0
      %659 = vmatmul.mubr.f32.gmra.mrb[0].mxu0 %v592
      %v660 = vpop.f32.mrb[0].mxu0
      %v661 = vadd.f32 %v588, %v660
      %v662 = vpop.f32.mrb[0].mxu0
      %663 = vdwg.mxu0
      %v664 = vld [vmem:[%s5] sm:$0xff]
      %v665 = vld [vmem:[%s5 + $0x8] sm:$0xff]
      %v666 = vld [vmem:[%s5 + $0x10] sm:$0xff]
      %v667 = vld [vmem:[%s5 + $0x18] sm:$0xff]
      %v668 = vld [vmem:[%s6] sm:$0x1]
      %v670 = vlaneseq
      %v671 = vshrl.u32 %v670, 7
      %v672 = vsub.s32 0, %v671
      %v673 = vrot.slane %v668, %v672
      %v676 = vsel %vm590, %v576, 0
      %678 = vmatprep.subr.mxu0 0.0
      %679 = vmatpush1.msra.mxu0 %v664
      %680 = vmatprep.subr.mxu0 0.0
      %681 = vmatpush1.msra.mxu0 %v665
      %682 = vmatprep.subr.mxu0 0.0
      %683 = vmatpush1.msra.mxu0 %v666
      %684 = vmatprep.subr.mxu0 0.0
      %685 = vmatpush1.msra.mxu0 %v667
      %686 = vmatprep.subr.mxu0 0.0
      %687 = vmatpush1.msra.mxu0 0.0
      %688 = vmatprep.subr.mxu0 0.0
      %689 = vmatpush1.msra.mxu0 0.0
      %690 = vmatprep.subr.mxu0 0.0
      %691 = vmatpush1.msra.mxu0 0.0
      %692 = vmatprep.subr.mxu0 0.0
      %693 = vmatpush1.msra.mxu0 0.0
      %694 = vmatprep.subr.mxu0 0.0
      %695 = vmatpush1.msra.mxu0 0.0
      %696 = vmatprep.subr.mxu0 0.0
      %697 = vmatpush1.msra.mxu0 0.0
      %698 = vmatprep.subr.mxu0 0.0
      %699 = vmatpush1.msra.mxu0 0.0
      %700 = vmatprep.subr.mxu0 0.0
      %701 = vmatpush1.msra.mxu0 0.0
      %702 = vmatprep.subr.mxu0 0.0
      %703 = vmatpush1.msra.mxu0 0.0
      %704 = vmatprep.subr.mxu0 0.0
      %705 = vmatpush1.msra.mxu0 0.0
      %706 = vmatprep.subr.mxu0 0.0
      %707 = vmatpush1.msra.mxu0 0.0
      %708 = vmatprep.subr.mxu0 0.0
      %709 = vmatpush1.msra.mxu0 0.0
      %710 = vmatprep.subr.mxu0 0.0
      %711 = vmatpush1.msra.mxu0 0.0
      %712 = vmatprep.subr.mxu0 0.0
      %713 = vmatpush1.msra.mxu0 0.0
      %714 = vmatprep.subr.mxu0 0.0
      %715 = vmatpush1.msra.mxu0 0.0
      %716 = vmatprep.subr.mxu0 0.0
      %717 = vmatpush1.msra.mxu0 0.0
      %718 = vmatprep.subr.mxu0 0.0
      %719 = vmatpush1.msra.mxu0 0.0
      %720 = vmatprep.subr.mxu0 0.0
      %721 = vmatpush1.msra.mxu0 0.0
      %722 = vmatprep.subr.mxu0 0.0
      %723 = vmatpush1.msra.mxu0 0.0
      %724 = vmatprep.subr.mxu0 0.0
      %725 = vmatpush1.msra.mxu0 0.0
      %726 = vmatprep.subr.mxu0 0.0
      %727 = vmatpush1.msra.mxu0 0.0
      %728 = vmatprep.subr.mxu0 0.0
      %729 = vmatpush1.msra.mxu0 0.0
      %730 = vmatprep.subr.mxu0 0.0
      %731 = vmatpush1.msra.mxu0 0.0
      %732 = vmatprep.subr.mxu0 0.0
      %733 = vmatpush1.msra.mxu0 0.0
      %734 = vmatprep.subr.mxu0 0.0
      %735 = vmatpush1.msra.mxu0 0.0
      %736 = vmatprep.subr.mxu0 0.0
      %737 = vmatpush1.msra.mxu0 0.0
      %738 = vmatprep.subr.mxu0 0.0
      %739 = vmatpush1.msra.mxu0 0.0
      %740 = vmatprep.subr.mxu0 0.0
      %741 = vmatpush1.msra.mxu0 0.0
      %742 = vmatprep.mubr.f32.mxu0 0.0
      %743 = vmatmul.mubr.f32.gmra.mrb[0].mxu0 %v676
      %v744 = vpop.f32.mrb[0].mxu0
      %v745 = vadd.f32 %v673, %v744
      %v746 = vpop.f32.mrb[0].mxu0
      %747 = vdwg.mxu0
      %v748 = vld [vmem:[%s7] sm:$0xff]
      %v749 = vld [vmem:[%s7 + $0x8] sm:$0xff]
      %v750 = vld [vmem:[%s7 + $0x10] sm:$0xff]
      %v751 = vld [vmem:[%s7 + $0x18] sm:$0xff]
      %v752 = vld [vmem:[%s8] sm:$0x1]
      %v754 = vlaneseq
      %v755 = vshrl.u32 %v754, 7
      %v756 = vsub.s32 0, %v755
      %v757 = vrot.slane %v752, %v756
      %759 = vmatprep.subr.mxu0 0.0
      %760 = vmatpush1.msra.mxu0 %v748
      %761 = vmatprep.subr.mxu0 0.0
      %762 = vmatpush1.msra.mxu0 %v749
      %763 = vmatprep.subr.mxu0 0.0
      %764 = vmatpush1.msra.mxu0 %v750
      %765 = vmatprep.subr.mxu0 0.0
      %766 = vmatpush1.msra.mxu0 %v751
      %767 = vmatprep.subr.mxu0 0.0
      %768 = vmatpush1.msra.mxu0 0.0
      %769 = vmatprep.subr.mxu0 0.0
      %770 = vmatpush1.msra.mxu0 0.0
      %771 = vmatprep.subr.mxu0 0.0
      %772 = vmatpush1.msra.mxu0 0.0
      %773 = vmatprep.subr.mxu0 0.0
      %774 = vmatpush1.msra.mxu0 0.0
      %775 = vmatprep.subr.mxu0 0.0
      %776 = vmatpush1.msra.mxu0 0.0
      %777 = vmatprep.subr.mxu0 0.0
      %778 = vmatpush1.msra.mxu0 0.0
      %779 = vmatprep.subr.mxu0 0.0
      %780 = vmatpush1.msra.mxu0 0.0
      %781 = vmatprep.subr.mxu0 0.0
      %782 = vmatpush1.msra.mxu0 0.0
      %783 = vmatprep.subr.mxu0 0.0
      %784 = vmatpush1.msra.mxu0 0.0
      %785 = vmatprep.subr.mxu0 0.0
      %786 = vmatpush1.msra.mxu0 0.0
      %787 = vmatprep.subr.mxu0 0.0
      %788 = vmatpush1.msra.mxu0 0.0
      %789 = vmatprep.subr.mxu0 0.0
      %790 = vmatpush1.msra.mxu0 0.0
      %791 = vmatprep.subr.mxu0 0.0
      %792 = vmatpush1.msra.mxu0 0.0
      %793 = vmatprep.subr.mxu0 0.0
      %794 = vmatpush1.msra.mxu0 0.0
      %795 = vmatprep.subr.mxu0 0.0
      %796 = vmatpush1.msra.mxu0 0.0
      %797 = vmatprep.subr.mxu0 0.0
      %798 = vmatpush1.msra.mxu0 0.0
      %799 = vmatprep.subr.mxu0 0.0
      %800 = vmatpush1.msra.mxu0 0.0
      %801 = vmatprep.subr.mxu0 0.0
      %802 = vmatpush1.msra.mxu0 0.0
      %803 = vmatprep.subr.mxu0 0.0
      %804 = vmatpush1.msra.mxu0 0.0
      %805 = vmatprep.subr.mxu0 0.0
      %806 = vmatpush1.msra.mxu0 0.0
      %807 = vmatprep.subr.mxu0 0.0
      %808 = vmatpush1.msra.mxu0 0.0
      %809 = vmatprep.subr.mxu0 0.0
      %810 = vmatpush1.msra.mxu0 0.0
      %811 = vmatprep.subr.mxu0 0.0
      %812 = vmatpush1.msra.mxu0 0.0
      %813 = vmatprep.subr.mxu0 0.0
      %814 = vmatpush1.msra.mxu0 0.0
      %815 = vmatprep.subr.mxu0 0.0
      %816 = vmatpush1.msra.mxu0 0.0
      %817 = vmatprep.subr.mxu0 0.0
      %818 = vmatpush1.msra.mxu0 0.0
      %819 = vmatprep.subr.mxu0 0.0
      %820 = vmatpush1.msra.mxu0 0.0
      %821 = vmatprep.subr.mxu0 0.0
      %822 = vmatpush1.msra.mxu0 0.0
      %823 = vmatprep.mubr.f32.mxu0 0.0
      %824 = vmatmul.mubr.f32.gmra.mrb[0].mxu0 %v676
      %v825 = vpop.f32.mrb[0].mxu0
      %v826 = vadd.f32 %v757, %v825
      %v827 = vpop.f32.mrb[0].mxu0
      %828 = vdwg.mxu0
      %v829 = vmul.f32 %v661, 0.35355338
      %vm830 = vcmask 64512
      %v832 = vsel %vm830, %v829, 0
      %v835 = vsel %vm830, %v745, 0
      %837 = vmatprep.subr.mxu0 0.0
      %838 = vmatpush1.xpose.msra.mxu0 %v835
      %839 = vmatprep.subr.mxu0 0.0
      %840 = vmatpush1.xpose.msra.mxu0 0.0
      %841 = vmatprep.subr.mxu0 0.0
      %842 = vmatpush1.xpose.msra.mxu0 0.0
      %843 = vmatprep.subr.mxu0 0.0
      %844 = vmatpush1.xpose.msra.mxu0 0.0
      %845 = vmatprep.subr.mxu0 0.0
      %846 = vmatpush1.xpose.msra.mxu0 0.0
      %847 = vmatprep.subr.mxu0 0.0
      %848 = vmatpush1.xpose.msra.mxu0 0.0
      %849 = vmatprep.subr.mxu0 0.0
      %850 = vmatpush1.xpose.msra.mxu0 0.0
      %851 = vmatprep.subr.mxu0 0.0
      %852 = vmatpush1.xpose.msra.mxu0 0.0
      %853 = vmatprep.subr.mxu0 0.0
      %854 = vmatpush1.xpose.msra.mxu0 0.0
      %855 = vmatprep.subr.mxu0 0.0
      %856 = vmatpush1.xpose.msra.mxu0 0.0
      %857 = vmatprep.subr.mxu0 0.0
      %858 = vmatpush1.xpose.msra.mxu0 0.0
      %859 = vmatprep.subr.mxu0 0.0
      %860 = vmatpush1.xpose.msra.mxu0 0.0
      %861 = vmatprep.subr.mxu0 0.0
      %862 = vmatpush1.xpose.msra.mxu0 0.0
      %863 = vmatprep.subr.mxu0 0.0
      %864 = vmatpush1.xpose.msra.mxu0 0.0
      %865 = vmatprep.subr.mxu0 0.0
      %866 = vmatpush1.xpose.msra.mxu0 0.0
      %867 = vmatprep.subr.mxu0 0.0
      %868 = vmatpush1.xpose.msra.mxu0 0.0
      %869 = vmatprep.subr.mxu0 0.0
      %870 = vmatpush1.xpose.msra.mxu0 0.0
      %871 = vmatprep.subr.mxu0 0.0
      %872 = vmatpush1.xpose.msra.mxu0 0.0
      %873 = vmatprep.subr.mxu0 0.0
      %874 = vmatpush1.xpose.msra.mxu0 0.0
      %875 = vmatprep.subr.mxu0 0.0
      %876 = vmatpush1.xpose.msra.mxu0 0.0
      %877 = vmatprep.subr.mxu0 0.0
      %878 = vmatpush1.xpose.msra.mxu0 0.0
      %879 = vmatprep.subr.mxu0 0.0
      %880 = vmatpush1.xpose.msra.mxu0 0.0
      %881 = vmatprep.subr.mxu0 0.0
      %882 = vmatpush1.xpose.msra.mxu0 0.0
      %883 = vmatprep.subr.mxu0 0.0
      %884 = vmatpush1.xpose.msra.mxu0 0.0
      %885 = vmatprep.subr.mxu0 0.0
      %886 = vmatpush1.xpose.msra.mxu0 0.0
      %887 = vmatprep.subr.mxu0 0.0
      %888 = vmatpush1.xpose.msra.mxu0 0.0
      %889 = vmatprep.subr.mxu0 0.0
      %890 = vmatpush1.xpose.msra.mxu0 0.0
      %891 = vmatprep.subr.mxu0 0.0
      %892 = vmatpush1.xpose.msra.mxu0 0.0
      %893 = vmatprep.subr.mxu0 0.0
      %894 = vmatpush1.xpose.msra.mxu0 0.0
      %895 = vmatprep.subr.mxu0 0.0
      %896 = vmatpush1.xpose.msra.mxu0 0.0
      %897 = vmatprep.subr.mxu0 0.0
      %898 = vmatpush1.xpose.msra.mxu0 0.0
      %899 = vmatprep.subr.mxu0 0.0
      %900 = vmatpush1.xpose.msra.mxu0 0.0
      %901 = vmatprep.mubr.f32.mxu0 0.0
      %902 = vmatmul.mubr.f32.gmra.mrb[0].mxu0 %v832
      %v903 = vpop.f32.mrb[0].mxu0
      %v904 = vadd.f32 0.0, %v903
      %v905 = vpop.f32.mrb[0].mxu0
      %906 = vdwg.mxu0
      %v907 = vsel %vm578, 1, 0
      %v908 = vlaneseq
      %v909 = vshrl.u32 %v908, 7
      %v910 = vsub.s32 0, %v909
      %v911 = vrot.slane %v907, %v910
      %vm912 = vcmp.eq.s32.totalorder %v911, 1
      %v913 = vsel %vm912, -1e+08, %v904
      %v914 = vsel %vm830, %v913, -inf
      %915 = vmax.xlane.f32.xlu0 %v914
      %v916 = vpop.xlane.xlu0 %915
      %v917 = vsub.f32 %v913, %v916
      %v918 = vmul.f32 %v917, 1.442695
      %v919 = vpow.pop %v918
      %v920 = vsel %vm830, %v919, 0.0
      %921 = vadd.xlane.f32.xlu0 %v920
      %v922 = vpop.xlane.xlu0 %921
      %v923 = vrcp.pop %v922
      %v924 = vmul.f32 %v919, %v923
      %v926 = vsel %vm830, %v924, 0
      %928 = vmatprep.subr.mxu0 0.0
      %929 = vmatpush1.msra.mxu0 %v826
      %930 = vmatprep.subr.mxu0 0.0
      %931 = vmatpush1.msra.mxu0 0.0
      %932 = vmatprep.subr.mxu0 0.0
      %933 = vmatpush1.msra.mxu0 0.0
      %934 = vmatprep.subr.mxu0 0.0
      %935 = vmatpush1.msra.mxu0 0.0
      %936 = vmatprep.subr.mxu0 0.0
      %937 = vmatpush1.msra.mxu0 0.0
      %938 = vmatprep.subr.mxu0 0.0
      %939 = vmatpush1.msra.mxu0 0.0
      %940 = vmatprep.subr.mxu0 0.0
      %941 = vmatpush1.msra.mxu0 0.0
      %942 = vmatprep.subr.mxu0 0.0
      %943 = vmatpush1.msra.mxu0 0.0
      %944 = vmatprep.subr.mxu0 0.0
      %945 = vmatpush1.msra.mxu0 0.0
      %946 = vmatprep.subr.mxu0 0.0
      %947 = vmatpush1.msra.mxu0 0.0
      %948 = vmatprep.subr.mxu0 0.0
      %949 = vmatpush1.msra.mxu0 0.0
      %950 = vmatprep.subr.mxu0 0.0
      %951 = vmatpush1.msra.mxu0 0.0
      %952 = vmatprep.subr.mxu0 0.0
      %953 = vmatpush1.msra.mxu0 0.0
      %954 = vmatprep.subr.mxu0 0.0
      %955 = vmatpush1.msra.mxu0 0.0
      %956 = vmatprep.subr.mxu0 0.0
      %957 = vmatpush1.msra.mxu0 0.0
      %958 = vmatprep.subr.mxu0 0.0
      %959 = vmatpush1.msra.mxu0 0.0
      %960 = vmatprep.subr.mxu0 0.0
      %961 = vmatpush1.msra.mxu0 0.0
      %962 = vmatprep.subr.mxu0 0.0
      %963 = vmatpush1.msra.mxu0 0.0
      %964 = vmatprep.subr.mxu0 0.0
      %965 = vmatpush1.msra.mxu0 0.0
      %966 = vmatprep.subr.mxu0 0.0
      %967 = vmatpush1.msra.mxu0 0.0
      %968 = vmatprep.subr.mxu0 0.0
      %969 = vmatpush1.msra.mxu0 0.0
      %970 = vmatprep.subr.mxu0 0.0
      %971 = vmatpush1.msra.mxu0 0.0
      %972 = vmatprep.subr.mxu0 0.0
      %973 = vmatpush1.msra.mxu0 0.0
      %974 = vmatprep.subr.mxu0 0.0
      %975 = vmatpush1.msra.mxu0 0.0
      %976 = vmatprep.subr.mxu0 0.0
      %977 = vmatpush1.msra.mxu0 0.0
      %978 = vmatprep.subr.mxu0 0.0
      %979 = vmatpush1.msra.mxu0 0.0
      %980 = vmatprep.subr.mxu0 0.0
      %981 = vmatpush1.msra.mxu0 0.0
      %982 = vmatprep.subr.mxu0 0.0
      %983 = vmatpush1.msra.mxu0 0.0
      %984 = vmatprep.subr.mxu0 0.0
      %985 = vmatpush1.msra.mxu0 0.0
      %986 = vmatprep.subr.mxu0 0.0
      %987 = vmatpush1.msra.mxu0 0.0
      %988 = vmatprep.subr.mxu0 0.0
      %989 = vmatpush1.msra.mxu0 0.0
      %990 = vmatprep.subr.mxu0 0.0
      %991 = vmatpush1.msra.mxu0 0.0
      %992 = vmatprep.mubr.f32.mxu0 0.0
      %993 = vmatmul.mubr.f32.gmra.mrb[0].mxu0 %v926
      %v994 = vpop.f32.mrb[0].mxu0
      %v995 = vadd.f32 0.0, %v994
      %v996 = vpop.f32.mrb[0].mxu0
      %997 = vdwg.mxu0
      %998 = vst.msk [vmem:[#allocation2] sm:$0xff] %vm830, %v995
      %999 = vrot.lane.b32.xlu0 %v829, 120
      %v1000 = vpop.permute.xlu0 %999
      %1001 = vrot.lane.b32.xlu0 %v745, 120
      %v1002 = vpop.permute.xlu0 %1001
      %v1003 = vsel %vm830, %v1000, 0
      %v1005 = vsel %vm830, %v1002, 0
      %1007 = vmatprep.subr.mxu0 0.0
      %1008 = vmatpush1.xpose.msra.mxu0 %v1005
      %1009 = vmatprep.subr.mxu0 0.0
      %1010 = vmatpush1.xpose.msra.mxu0 0.0
      %1011 = vmatprep.subr.mxu0 0.0
      %1012 = vmatpush1.xpose.msra.mxu0 0.0
      %1013 = vmatprep.subr.mxu0 0.0
      %1014 = vmatpush1.xpose.msra.mxu0 0.0
      %1015 = vmatprep.subr.mxu0 0.0
      %1016 = vmatpush1.xpose.msra.mxu0 0.0
      %1017 = vmatprep.subr.mxu0 0.0
      %1018 = vmatpush1.xpose.msra.mxu0 0.0
      %1019 = vmatprep.subr.mxu0 0.0
      %1020 = vmatpush1.xpose.msra.mxu0 0.0
      %1021 = vmatprep.subr.mxu0 0.0
      %1022 = vmatpush1.xpose.msra.mxu0 0.0
      %1023 = vmatprep.subr.mxu0 0.0
      %1024 = vmatpush1.xpose.msra.mxu0 0.0
      %1025 = vmatprep.subr.mxu0 0.0
      %1026 = vmatpush1.xpose.msra.mxu0 0.0
      %1027 = vmatprep.subr.mxu0 0.0
      %1028 = vmatpush1.xpose.msra.mxu0 0.0
      %1029 = vmatprep.subr.mxu0 0.0
      %1030 = vmatpush1.xpose.msra.mxu0 0.0
      %1031 = vmatprep.subr.mxu0 0.0
      %1032 = vmatpush1.xpose.msra.mxu0 0.0
      %1033 = vmatprep.subr.mxu0 0.0
      %1034 = vmatpush1.xpose.msra.mxu0 0.0
      %1035 = vmatprep.subr.mxu0 0.0
      %1036 = vmatpush1.xpose.msra.mxu0 0.0
      %1037 = vmatprep.subr.mxu0 0.0
      %1038 = vmatpush1.xpose.msra.mxu0 0.0
      %1039 = vmatprep.subr.mxu0 0.0
      %1040 = vmatpush1.xpose.msra.mxu0 0.0
      %1041 = vmatprep.subr.mxu0 0.0
      %1042 = vmatpush1.xpose.msra.mxu0 0.0
      %1043 = vmatprep.subr.mxu0 0.0
      %1044 = vmatpush1.xpose.msra.mxu0 0.0
      %1045 = vmatprep.subr.mxu0 0.0
      %1046 = vmatpush1.xpose.msra.mxu0 0.0
      %1047 = vmatprep.subr.mxu0 0.0
      %1048 = vmatpush1.xpose.msra.mxu0 0.0
      %1049 = vmatprep.subr.mxu0 0.0
      %1050 = vmatpush1.xpose.msra.mxu0 0.0
      %1051 = vmatprep.subr.mxu0 0.0
      %1052 = vmatpush1.xpose.msra.mxu0 0.0
      %1053 = vmatprep.subr.mxu0 0.0
      %1054 = vmatpush1.xpose.msra.mxu0 0.0
      %1055 = vmatprep.subr.mxu0 0.0
      %1056 = vmatpush1.xpose.msra.mxu0 0.0
      %1057 = vmatprep.subr.mxu0 0.0
      %1058 = vmatpush1.xpose.msra.mxu0 0.0
      %1059 = vmatprep.subr.mxu0 0.0
      %1060 = vmatpush1.xpose.msra.mxu0 0.0
      %1061 = vmatprep.subr.mxu0 0.0
      %1062 = vmatpush1.xpose.msra.mxu0 0.0
      %1063 = vmatprep.subr.mxu0 0.0
      %1064 = vmatpush1.xpose.msra.mxu0 0.0
      %1065 = vmatprep.subr.mxu0 0.0
      %1066 = vmatpush1.xpose.msra.mxu0 0.0
      %1067 = vmatprep.subr.mxu0 0.0
      %1068 = vmatpush1.xpose.msra.mxu0 0.0
      %1069 = vmatprep.subr.mxu0 0.0
      %1070 = vmatpush1.xpose.msra.mxu0 0.0
      %1071 = vmatprep.mubr.f32.mxu0 0.0
      %1072 = vmatmul.mubr.f32.gmra.mrb[0].mxu0 %v1003
      %v1073 = vpop.f32.mrb[0].mxu0
      %v1074 = vadd.f32 0.0, %v1073
      %v1075 = vpop.f32.mrb[0].mxu0
      %1076 = vdwg.mxu0
      %v1077 = vsel %vm912, -1e+08, %v1074
      %v1078 = vsel %vm830, %v1077, -inf
      %1079 = vmax.xlane.f32.xlu0 %v1078
      %v1080 = vpop.xlane.xlu0 %1079
      %v1081 = vsub.f32 %v1077, %v1080
      %v1082 = vmul.f32 %v1081, 1.442695
      %v1083 = vpow.pop %v1082
      %v1084 = vsel %vm830, %v1083, 0.0
      %1085 = vadd.xlane.f32.xlu0 %v1084
      %v1086 = vpop.xlane.xlu0 %1085
      %v1087 = vrcp.pop %v1086
      %v1088 = vmul.f32 %v1083, %v1087
      %1090 = vrot.lane.b32.xlu0 %v826, 120
      %v1091 = vpop.permute.xlu0 %1090
      %v1094 = vsel %vm830, %v1088, 0
      %1096 = vmatprep.subr.mxu0 0.0
      %1097 = vmatpush1.msra.mxu0 %v1091
      %1098 = vmatprep.subr.mxu0 0.0
      %1099 = vmatpush1.msra.mxu0 0.0
      %1100 = vmatprep.subr.mxu0 0.0
      %1101 = vmatpush1.msra.mxu0 0.0
      %1102 = vmatprep.subr.mxu0 0.0
      %1103 = vmatpush1.msra.mxu0 0.0
      %1104 = vmatprep.subr.mxu0 0.0
      %1105 = vmatpush1.msra.mxu0 0.0
      %1106 = vmatprep.subr.mxu0 0.0
      %1107 = vmatpush1.msra.mxu0 0.0
      %1108 = vmatprep.subr.mxu0 0.0
      %1109 = vmatpush1.msra.mxu0 0.0
      %1110 = vmatprep.subr.mxu0 0.0
      %1111 = vmatpush1.msra.mxu0 0.0
      %1112 = vmatprep.subr.mxu0 0.0
      %1113 = vmatpush1.msra.mxu0 0.0
      %1114 = vmatprep.subr.mxu0 0.0
      %1115 = vmatpush1.msra.mxu0 0.0
      %1116 = vmatprep.subr.mxu0 0.0
      %1117 = vmatpush1.msra.mxu0 0.0
      %1118 = vmatprep.subr.mxu0 0.0
      %1119 = vmatpush1.msra.mxu0 0.0
      %1120 = vmatprep.subr.mxu0 0.0
      %1121 = vmatpush1.msra.mxu0 0.0
      %1122 = vmatprep.subr.mxu0 0.0
      %1123 = vmatpush1.msra.mxu0 0.0
      %1124 = vmatprep.subr.mxu0 0.0
      %1125 = vmatpush1.msra.mxu0 0.0
      %1126 = vmatprep.subr.mxu0 0.0
      %1127 = vmatpush1.msra.mxu0 0.0
      %1128 = vmatprep.subr.mxu0 0.0
      %1129 = vmatpush1.msra.mxu0 0.0
      %1130 = vmatprep.subr.mxu0 0.0
      %1131 = vmatpush1.msra.mxu0 0.0
      %1132 = vmatprep.subr.mxu0 0.0
      %1133 = vmatpush1.msra.mxu0 0.0
      %1134 = vmatprep.subr.mxu0 0.0
      %1135 = vmatpush1.msra.mxu0 0.0
      %1136 = vmatprep.subr.mxu0 0.0
      %1137 = vmatpush1.msra.mxu0 0.0
      %1138 = vmatprep.subr.mxu0 0.0
      %1139 = vmatpush1.msra.mxu0 0.0
      %1140 = vmatprep.subr.mxu0 0.0
      %1141 = vmatpush1.msra.mxu0 0.0
      %1142 = vmatprep.subr.mxu0 0.0
      %1143 = vmatpush1.msra.mxu0 0.0
      %1144 = vmatprep.subr.mxu0 0.0
      %1145 = vmatpush1.msra.mxu0 0.0
      %1146 = vmatprep.subr.mxu0 0.0
      %1147 = vmatpush1.msra.mxu0 0.0
      %1148 = vmatprep.subr.mxu0 0.0
      %1149 = vmatpush1.msra.mxu0 0.0
      %1150 = vmatprep.subr.mxu0 0.0
      %1151 = vmatpush1.msra.mxu0 0.0
      %1152 = vmatprep.subr.mxu0 0.0
      %1153 = vmatpush1.msra.mxu0 0.0
      %1154 = vmatprep.subr.mxu0 0.0
      %1155 = vmatpush1.msra.mxu0 0.0
      %1156 = vmatprep.subr.mxu0 0.0
      %1157 = vmatpush1.msra.mxu0 0.0
      %1158 = vmatprep.subr.mxu0 0.0
      %1159 = vmatpush1.msra.mxu0 0.0
      %1160 = vmatprep.mubr.f32.mxu0 0.0
      %1161 = vmatmul.mubr.f32.gmra.mrb[0].mxu0 %v1094
      %v1162 = vpop.f32.mrb[0].mxu0
      %v1163 = vadd.f32 0.0, %v1162
      %v1164 = vpop.f32.mrb[0].mxu0
      %1165 = vdwg.mxu0
      %1167 = vrot.lane.b32.xlu0 %v1163, 8
      %v1168 = vpop.permute.xlu0 %1167
      %vm1170 = vcmask 130112
      %1171 = vst.msk [vmem:[#allocation2] sm:$0xff] %vm1170, %v1168
      %1172 = vrot.lane.b32.xlu0 %v829, 112
      %v1173 = vpop.permute.xlu0 %1172
      %1174 = vrot.lane.b32.xlu0 %v745, 112
      %v1175 = vpop.permute.xlu0 %1174
      %v1176 = vsel %vm830, %v1173, 0
      %v1178 = vsel %vm830, %v1175, 0
      %1180 = vmatprep.subr.mxu0 0.0
      %1181 = vmatpush1.xpose.msra.mxu0 %v1178
      %1182 = vmatprep.subr.mxu0 0.0
      %1183 = vmatpush1.xpose.msra.mxu0 0.0
      %1184 = vmatprep.subr.mxu0 0.0
      %1185 = vmatpush1.xpose.msra.mxu0 0.0
      %1186 = vmatprep.subr.mxu0 0.0
      %1187 = vmatpush1.xpose.msra.mxu0 0.0
      %1188 = vmatprep.subr.mxu0 0.0
      %1189 = vmatpush1.xpose.msra.mxu0 0.0
      %1190 = vmatprep.subr.mxu0 0.0
      %1191 = vmatpush1.xpose.msra.mxu0 0.0
      %1192 = vmatprep.subr.mxu0 0.0
      %1193 = vmatpush1.xpose.msra.mxu0 0.0
      %1194 = vmatprep.subr.mxu0 0.0
      %1195 = vmatpush1.xpose.msra.mxu0 0.0
      %1196 = vmatprep.subr.mxu0 0.0
      %1197 = vmatpush1.xpose.msra.mxu0 0.0
      %1198 = vmatprep.subr.mxu0 0.0
      %1199 = vmatpush1.xpose.msra.mxu0 0.0
      %1200 = vmatprep.subr.mxu0 0.0
      %1201 = vmatpush1.xpose.msra.mxu0 0.0
      %1202 = vmatprep.subr.mxu0 0.0
      %1203 = vmatpush1.xpose.msra.mxu0 0.0
      %1204 = vmatprep.subr.mxu0 0.0
      %1205 = vmatpush1.xpose.msra.mxu0 0.0
      %1206 = vmatprep.subr.mxu0 0.0
      %1207 = vmatpush1.xpose.msra.mxu0 0.0
      %1208 = vmatprep.subr.mxu0 0.0
      %1209 = vmatpush1.xpose.msra.mxu0 0.0
      %1210 = vmatprep.subr.mxu0 0.0
      %1211 = vmatpush1.xpose.msra.mxu0 0.0
      %1212 = vmatprep.subr.mxu0 0.0
      %1213 = vmatpush1.xpose.msra.mxu0 0.0
      %1214 = vmatprep.subr.mxu0 0.0
      %1215 = vmatpush1.xpose.msra.mxu0 0.0
      %1216 = vmatprep.subr.mxu0 0.0
      %1217 = vmatpush1.xpose.msra.mxu0 0.0
      %1218 = vmatprep.subr.mxu0 0.0
      %1219 = vmatpush1.xpose.msra.mxu0 0.0
      %1220 = vmatprep.subr.mxu0 0.0
      %1221 = vmatpush1.xpose.msra.mxu0 0.0
      %1222 = vmatprep.subr.mxu0 0.0
      %1223 = vmatpush1.xpose.msra.mxu0 0.0
      %1224 = vmatprep.subr.mxu0 0.0
      %1225 = vmatpush1.xpose.msra.mxu0 0.0
      %1226 = vmatprep.subr.mxu0 0.0
      %1227 = vmatpush1.xpose.msra.mxu0 0.0
      %1228 = vmatprep.subr.mxu0 0.0
      %1229 = vmatpush1.xpose.msra.mxu0 0.0
      %1230 = vmatprep.subr.mxu0 0.0
      %1231 = vmatpush1.xpose.msra.mxu0 0.0
      %1232 = vmatprep.subr.mxu0 0.0
      %1233 = vmatpush1.xpose.msra.mxu0 0.0
      %1234 = vmatprep.subr.mxu0 0.0
      %1235 = vmatpush1.xpose.msra.mxu0 0.0
      %1236 = vmatprep.subr.mxu0 0.0
      %1237 = vmatpush1.xpose.msra.mxu0 0.0
      %1238 = vmatprep.subr.mxu0 0.0
      %1239 = vmatpush1.xpose.msra.mxu0 0.0
      %1240 = vmatprep.subr.mxu0 0.0
      %1241 = vmatpush1.xpose.msra.mxu0 0.0
      %1242 = vmatprep.subr.mxu0 0.0
      %1243 = vmatpush1.xpose.msra.mxu0 0.0
      %1244 = vmatprep.mubr.f32.mxu0 0.0
      %1245 = vmatmul.mubr.f32.gmra.mrb[0].mxu0 %v1176
      %v1246 = vpop.f32.mrb[0].mxu0
      %v1247 = vadd.f32 0.0, %v1246
      %v1248 = vpop.f32.mrb[0].mxu0
      %1249 = vdwg.mxu0
      %v1250 = vsel %vm912, -1e+08, %v1247
      %v1251 = vsel %vm830, %v1250, -inf
      %1252 = vmax.xlane.f32.xlu0 %v1251
      %v1253 = vpop.xlane.xlu0 %1252
      %v1254 = vsub.f32 %v1250, %v1253
      %v1255 = vmul.f32 %v1254, 1.442695
      %v1256 = vpow.pop %v1255
      %v1257 = vsel %vm830, %v1256, 0.0
      %1258 = vadd.xlane.f32.xlu0 %v1257
      %v1259 = vpop.xlane.xlu0 %1258
      %v1260 = vrcp.pop %v1259
      %v1261 = vmul.f32 %v1256, %v1260
      %1262 = vrot.lane.b32.xlu0 %v826, 112
      %v1263 = vpop.permute.xlu0 %1262
      %v1266 = vsel %vm830, %v1261, 0
      %1268 = vmatprep.subr.mxu0 0.0
      %1269 = vmatpush1.msra.mxu0 %v1263
      %1270 = vmatprep.subr.mxu0 0.0
      %1271 = vmatpush1.msra.mxu0 0.0
      %1272 = vmatprep.subr.mxu0 0.0
      %1273 = vmatpush1.msra.mxu0 0.0
      %1274 = vmatprep.subr.mxu0 0.0
      %1275 = vmatpush1.msra.mxu0 0.0
      %1276 = vmatprep.subr.mxu0 0.0
      %1277 = vmatpush1.msra.mxu0 0.0
      %1278 = vmatprep.subr.mxu0 0.0
      %1279 = vmatpush1.msra.mxu0 0.0
      %1280 = vmatprep.subr.mxu0 0.0
      %1281 = vmatpush1.msra.mxu0 0.0
      %1282 = vmatprep.subr.mxu0 0.0
      %1283 = vmatpush1.msra.mxu0 0.0
      %1284 = vmatprep.subr.mxu0 0.0
      %1285 = vmatpush1.msra.mxu0 0.0
      %1286 = vmatprep.subr.mxu0 0.0
      %1287 = vmatpush1.msra.mxu0 0.0
      %1288 = vmatprep.subr.mxu0 0.0
      %1289 = vmatpush1.msra.mxu0 0.0
      %1290 = vmatprep.subr.mxu0 0.0
      %1291 = vmatpush1.msra.mxu0 0.0
      %1292 = vmatprep.subr.mxu0 0.0
      %1293 = vmatpush1.msra.mxu0 0.0
      %1294 = vmatprep.subr.mxu0 0.0
      %1295 = vmatpush1.msra.mxu0 0.0
      %1296 = vmatprep.subr.mxu0 0.0
      %1297 = vmatpush1.msra.mxu0 0.0
      %1298 = vmatprep.subr.mxu0 0.0
      %1299 = vmatpush1.msra.mxu0 0.0
      %1300 = vmatprep.subr.mxu0 0.0
      %1301 = vmatpush1.msra.mxu0 0.0
      %1302 = vmatprep.subr.mxu0 0.0
      %1303 = vmatpush1.msra.mxu0 0.0
      %1304 = vmatprep.subr.mxu0 0.0
      %1305 = vmatpush1.msra.mxu0 0.0
      %1306 = vmatprep.subr.mxu0 0.0
      %1307 = vmatpush1.msra.mxu0 0.0
      %1308 = vmatprep.subr.mxu0 0.0
      %1309 = vmatpush1.msra.mxu0 0.0
      %1310 = vmatprep.subr.mxu0 0.0
      %1311 = vmatpush1.msra.mxu0 0.0
      %1312 = vmatprep.subr.mxu0 0.0
      %1313 = vmatpush1.msra.mxu0 0.0
      %1314 = vmatprep.subr.mxu0 0.0
      %1315 = vmatpush1.msra.mxu0 0.0
      %1316 = vmatprep.subr.mxu0 0.0
      %1317 = vmatpush1.msra.mxu0 0.0
      %1318 = vmatprep.subr.mxu0 0.0
      %1319 = vmatpush1.msra.mxu0 0.0
      %1320 = vmatprep.subr.mxu0 0.0
      %1321 = vmatpush1.msra.mxu0 0.0
      %1322 = vmatprep.subr.mxu0 0.0
      %1323 = vmatpush1.msra.mxu0 0.0
      %1324 = vmatprep.subr.mxu0 0.0
      %1325 = vmatpush1.msra.mxu0 0.0
      %1326 = vmatprep.subr.mxu0 0.0
      %1327 = vmatpush1.msra.mxu0 0.0
      %1328 = vmatprep.subr.mxu0 0.0
      %1329 = vmatpush1.msra.mxu0 0.0
      %1330 = vmatprep.subr.mxu0 0.0
      %1331 = vmatpush1.msra.mxu0 0.0
      %1332 = vmatprep.mubr.f32.mxu0 0.0
      %1333 = vmatmul.mubr.f32.gmra.mrb[0].mxu0 %v1266
      %v1334 = vpop.f32.mrb[0].mxu0
      %v1335 = vadd.f32 0.0, %v1334
      %v1336 = vpop.f32.mrb[0].mxu0
      %1337 = vdwg.mxu0
      %1339 = vrot.lane.b32.xlu0 %v1335, 16
      %v1340 = vpop.permute.xlu0 %1339
      %vm1342 = vcmask 195712
      %1343 = vst.msk [vmem:[#allocation2] sm:$0xff] %vm1342, %v1340
      %1344 = vrot.lane.b32.xlu0 %v829, 104
      %v1345 = vpop.permute.xlu0 %1344
      %1346 = vrot.lane.b32.xlu0 %v745, 104
      %v1347 = vpop.permute.xlu0 %1346
      %v1348 = vsel %vm830, %v1345, 0
      %v1350 = vsel %vm830, %v1347, 0
      %1352 = vmatprep.subr.mxu0 0.0
      %1353 = vmatpush1.xpose.msra.mxu0 %v1350
      %1354 = vmatprep.subr.mxu0 0.0
      %1355 = vmatpush1.xpose.msra.mxu0 0.0
      %1356 = vmatprep.subr.mxu0 0.0
      %1357 = vmatpush1.xpose.msra.mxu0 0.0
      %1358 = vmatprep.subr.mxu0 0.0
      %1359 = vmatpush1.xpose.msra.mxu0 0.0
      %1360 = vmatprep.subr.mxu0 0.0
      %1361 = vmatpush1.xpose.msra.mxu0 0.0
      %1362 = vmatprep.subr.mxu0 0.0
      %1363 = vmatpush1.xpose.msra.mxu0 0.0
      %1364 = vmatprep.subr.mxu0 0.0
      %1365 = vmatpush1.xpose.msra.mxu0 0.0
      %1366 = vmatprep.subr.mxu0 0.0
      %1367 = vmatpush1.xpose.msra.mxu0 0.0
      %1368 = vmatprep.subr.mxu0 0.0
      %1369 = vmatpush1.xpose.msra.mxu0 0.0
      %1370 = vmatprep.subr.mxu0 0.0
      %1371 = vmatpush1.xpose.msra.mxu0 0.0
      %1372 = vmatprep.subr.mxu0 0.0
      %1373 = vmatpush1.xpose.msra.mxu0 0.0
      %1374 = vmatprep.subr.mxu0 0.0
      %1375 = vmatpush1.xpose.msra.mxu0 0.0
      %1376 = vmatprep.subr.mxu0 0.0
      %1377 = vmatpush1.xpose.msra.mxu0 0.0
      %1378 = vmatprep.subr.mxu0 0.0
      %1379 = vmatpush1.xpose.msra.mxu0 0.0
      %1380 = vmatprep.subr.mxu0 0.0
      %1381 = vmatpush1.xpose.msra.mxu0 0.0
      %1382 = vmatprep.subr.mxu0 0.0
      %1383 = vmatpush1.xpose.msra.mxu0 0.0
      %1384 = vmatprep.subr.mxu0 0.0
      %1385 = vmatpush1.xpose.msra.mxu0 0.0
      %1386 = vmatprep.subr.mxu0 0.0
      %1387 = vmatpush1.xpose.msra.mxu0 0.0
      %1388 = vmatprep.subr.mxu0 0.0
      %1389 = vmatpush1.xpose.msra.mxu0 0.0
      %1390 = vmatprep.subr.mxu0 0.0
      %1391 = vmatpush1.xpose.msra.mxu0 0.0
      %1392 = vmatprep.subr.mxu0 0.0
      %1393 = vmatpush1.xpose.msra.mxu0 0.0
      %1394 = vmatprep.subr.mxu0 0.0
      %1395 = vmatpush1.xpose.msra.mxu0 0.0
      %1396 = vmatprep.subr.mxu0 0.0
      %1397 = vmatpush1.xpose.msra.mxu0 0.0
      %1398 = vmatprep.subr.mxu0 0.0
      %1399 = vmatpush1.xpose.msra.mxu0 0.0
      %1400 = vmatprep.subr.mxu0 0.0
      %1401 = vmatpush1.xpose.msra.mxu0 0.0
      %1402 = vmatprep.subr.mxu0 0.0
      %1403 = vmatpush1.xpose.msra.mxu0 0.0
      %1404 = vmatprep.subr.mxu0 0.0
      %1405 = vmatpush1.xpose.msra.mxu0 0.0
      %1406 = vmatprep.subr.mxu0 0.0
      %1407 = vmatpush1.xpose.msra.mxu0 0.0
      %1408 = vmatprep.subr.mxu0 0.0
      %1409 = vmatpush1.xpose.msra.mxu0 0.0
      %1410 = vmatprep.subr.mxu0 0.0
      %1411 = vmatpush1.xpose.msra.mxu0 0.0
      %1412 = vmatprep.subr.mxu0 0.0
      %1413 = vmatpush1.xpose.msra.mxu0 0.0
      %1414 = vmatprep.subr.mxu0 0.0
      %1415 = vmatpush1.xpose.msra.mxu0 0.0
      %1416 = vmatprep.mubr.f32.mxu0 0.0
      %1417 = vmatmul.mubr.f32.gmra.mrb[0].mxu0 %v1348
      %v1418 = vpop.f32.mrb[0].mxu0
      %v1419 = vadd.f32 0.0, %v1418
      %v1420 = vpop.f32.mrb[0].mxu0
      %1421 = vdwg.mxu0
      %v1422 = vsel %vm912, -1e+08, %v1419
      %v1423 = vsel %vm830, %v1422, -inf
      %1424 = vmax.xlane.f32.xlu0 %v1423
      %v1425 = vpop.xlane.xlu0 %1424
      %v1426 = vsub.f32 %v1422, %v1425
      %v1427 = vmul.f32 %v1426, 1.442695
      %v1428 = vpow.pop %v1427
      %v1429 = vsel %vm830, %v1428, 0.0
      %1430 = vadd.xlane.f32.xlu0 %v1429
      %v1431 = vpop.xlane.xlu0 %1430
      %v1432 = vrcp.pop %v1431
      %v1433 = vmul.f32 %v1428, %v1432
      %1434 = vrot.lane.b32.xlu0 %v826, 104
      %v1435 = vpop.permute.xlu0 %1434
      %v1438 = vsel %vm830, %v1433, 0
      %1440 = vmatprep.subr.mxu0 0.0
      %1441 = vmatpush1.msra.mxu0 %v1435
      %1442 = vmatprep.subr.mxu0 0.0
      %1443 = vmatpush1.msra.mxu0 0.0
      %1444 = vmatprep.subr.mxu0 0.0
      %1445 = vmatpush1.msra.mxu0 0.0
      %1446 = vmatprep.subr.mxu0 0.0
      %1447 = vmatpush1.msra.mxu0 0.0
      %1448 = vmatprep.subr.mxu0 0.0
      %1449 = vmatpush1.msra.mxu0 0.0
      %1450 = vmatprep.subr.mxu0 0.0
      %1451 = vmatpush1.msra.mxu0 0.0
      %1452 = vmatprep.subr.mxu0 0.0
      %1453 = vmatpush1.msra.mxu0 0.0
      %1454 = vmatprep.subr.mxu0 0.0
      %1455 = vmatpush1.msra.mxu0 0.0
      %1456 = vmatprep.subr.mxu0 0.0
      %1457 = vmatpush1.msra.mxu0 0.0
      %1458 = vmatprep.subr.mxu0 0.0
      %1459 = vmatpush1.msra.mxu0 0.0
      %1460 = vmatprep.subr.mxu0 0.0
      %1461 = vmatpush1.msra.mxu0 0.0
      %1462 = vmatprep.subr.mxu0 0.0
      %1463 = vmatpush1.msra.mxu0 0.0
      %1464 = vmatprep.subr.mxu0 0.0
      %1465 = vmatpush1.msra.mxu0 0.0
      %1466 = vmatprep.subr.mxu0 0.0
      %1467 = vmatpush1.msra.mxu0 0.0
      %1468 = vmatprep.subr.mxu0 0.0
      %1469 = vmatpush1.msra.mxu0 0.0
      %1470 = vmatprep.subr.mxu0 0.0
      %1471 = vmatpush1.msra.mxu0 0.0
      %1472 = vmatprep.subr.mxu0 0.0
      %1473 = vmatpush1.msra.mxu0 0.0
      %1474 = vmatprep.subr.mxu0 0.0
      %1475 = vmatpush1.msra.mxu0 0.0
      %1476 = vmatprep.subr.mxu0 0.0
      %1477 = vmatpush1.msra.mxu0 0.0
      %1478 = vmatprep.subr.mxu0 0.0
      %1479 = vmatpush1.msra.mxu0 0.0
      %1480 = vmatprep.subr.mxu0 0.0
      %1481 = vmatpush1.msra.mxu0 0.0
      %1482 = vmatprep.subr.mxu0 0.0
      %1483 = vmatpush1.msra.mxu0 0.0
      %1484 = vmatprep.subr.mxu0 0.0
      %1485 = vmatpush1.msra.mxu0 0.0
      %1486 = vmatprep.subr.mxu0 0.0
      %1487 = vmatpush1.msra.mxu0 0.0
      %1488 = vmatprep.subr.mxu0 0.0
      %1489 = vmatpush1.msra.mxu0 0.0
      %1490 = vmatprep.subr.mxu0 0.0
      %1491 = vmatpush1.msra.mxu0 0.0
      %1492 = vmatprep.subr.mxu0 0.0
      %1493 = vmatpush1.msra.mxu0 0.0
      %1494 = vmatprep.subr.mxu0 0.0
      %1495 = vmatpush1.msra.mxu0 0.0
      %1496 = vmatprep.subr.mxu0 0.0
      %1497 = vmatpush1.msra.mxu0 0.0
      %1498 = vmatprep.subr.mxu0 0.0
      %1499 = vmatpush1.msra.mxu0 0.0
      %1500 = vmatprep.subr.mxu0 0.0
      %1501 = vmatpush1.msra.mxu0 0.0
      %1502 = vmatprep.subr.mxu0 0.0
      %1503 = vmatpush1.msra.mxu0 0.0
      %1504 = vmatprep.mubr.f32.mxu0 0.0
      %1505 = vmatmul.mubr.f32.gmra.mrb[0].mxu0 %v1438
      %v1506 = vpop.f32.mrb[0].mxu0
      %v1507 = vadd.f32 0.0, %v1506
      %v1508 = vpop.f32.mrb[0].mxu0
      %1509 = vdwg.mxu0
      %1511 = vrot.lane.b32.xlu0 %v1507, 24
      %v1512 = vpop.permute.xlu0 %1511
      %vm1514 = vcmask 261312
      %1515 = vst.msk [vmem:[#allocation2] sm:$0xff] %vm1514, %v1512
      %v1516 = vld [vmem:[#allocation2] sm:$0xff]
      %v1517 = vld [vmem:[%s9] sm:$0xff]
      %v1518 = vld [vmem:[%s10] sm:$0xff]
      %v1519 = vsel %vm590, %v1516, 0.0
      %1520 = vadd.xlane.f32.xlu0 %v1519
      %v1521 = vpop.xlane.xlu0 %1520
      %v1522 = vrcp.pop 32.0
      %v1523 = vmul.f32 %v1521, %v1522
      %v1524 = vsub.f32 %v1516, %v1523
      %v1525 = vmul.f32 %v1524, %v1524
      %v1526 = vsel %vm590, %v1525, 0.0
      %1527 = vadd.xlane.f32.xlu0 %v1526
      %v1528 = vpop.xlane.xlu0 %1527
      %v1529 = vrcp.pop 31.0
      %v1530 = vmul.f32 %v1528, %v1529
      %v1531 = vrsqrt.pop %v1530
      %v1532 = vmul.f32 %v1530, %v1531
      %vm1533 = vcmp.eq.f32.partialorder %v1530, inf
      %v1534 = vsel %vm1533, %v1530, %v1532
      %vm1535 = vcmp.eq.f32.partialorder %v1530, 0.0
      %v1536 = vand.u32 %v1530, 2147483648
      %v1537 = vsel %vm1535, %v1536, %v1534
      %v1538 = vadd.f32 %v1537, 1e-08
      %v1539 = vrcp.pop %v1538
      %v1540 = vmul.f32 %v1524, %v1539
      %v1541 = vmul.f32 %v1517, %v1540
      %v1542 = vadd.f32 %v1541, %v1518
      %v1543 = vadd.f32 %v575, %v1542
      %v1544 = vld [vmem:[%s11] sm:$0xff]
      %v1545 = vld [vmem:[%s11 + $0x8] sm:$0xff]
      %v1546 = vld [vmem:[%s11 + $0x10] sm:$0xff]
      %v1547 = vld [vmem:[%s11 + $0x18] sm:$0xff]
      %v1548 = vld [vmem:[%s12] sm:$0x1]
      %v1550 = vlaneseq
      %v1551 = vshrl.u32 %v1550, 7
      %v1552 = vsub.s32 0, %v1551
      %v1553 = vrot.slane %v1548, %v1552
      %v1556 = vsel %vm590, %v1543, 0
      %1558 = vmatprep.subr.mxu0 0.0
      %1559 = vmatpush1.msra.mxu0 %v1544
      %1560 = vmatprep.subr.mxu0 0.0
      %1561 = vmatpush1.msra.mxu0 %v1545
      %1562 = vmatprep.subr.mxu0 0.0
      %1563 = vmatpush1.msra.mxu0 %v1546
      %1564 = vmatprep.subr.mxu0 0.0
      %1565 = vmatpush1.msra.mxu0 %v1547
      %1566 = vmatprep.subr.mxu0 0.0
      %1567 = vmatpush1.msra.mxu0 0.0
      %1568 = vmatprep.subr.mxu0 0.0
      %1569 = vmatpush1.msra.mxu0 0.0
      %1570 = vmatprep.subr.mxu0 0.0
      %1571 = vmatpush1.msra.mxu0 0.0
      %1572 = vmatprep.subr.mxu0 0.0
      %1573 = vmatpush1.msra.mxu0 0.0
      %1574 = vmatprep.subr.mxu0 0.0
      %1575 = vmatpush1.msra.mxu0 0.0
      %1576 = vmatprep.subr.mxu0 0.0
      %1577 = vmatpush1.msra.mxu0 0.0
      %1578 = vmatprep.subr.mxu0 0.0
      %1579 = vmatpush1.msra.mxu0 0.0
      %1580 = vmatprep.subr.mxu0 0.0
      %1581 = vmatpush1.msra.mxu0 0.0
      %1582 = vmatprep.subr.mxu0 0.0
      %1583 = vmatpush1.msra.mxu0 0.0
      %1584 = vmatprep.subr.mxu0 0.0
      %1585 = vmatpush1.msra.mxu0 0.0
      %1586 = vmatprep.subr.mxu0 0.0
      %1587 = vmatpush1.msra.mxu0 0.0
      %1588 = vmatprep.subr.mxu0 0.0
      %1589 = vmatpush1.msra.mxu0 0.0
      %1590 = vmatprep.subr.mxu0 0.0
      %1591 = vmatpush1.msra.mxu0 0.0
      %1592 = vmatprep.subr.mxu0 0.0
      %1593 = vmatpush1.msra.mxu0 0.0
      %1594 = vmatprep.subr.mxu0 0.0
      %1595 = vmatpush1.msra.mxu0 0.0
      %1596 = vmatprep.subr.mxu0 0.0
      %1597 = vmatpush1.msra.mxu0 0.0
      %1598 = vmatprep.subr.mxu0 0.0
      %1599 = vmatpush1.msra.mxu0 0.0
      %1600 = vmatprep.subr.mxu0 0.0
      %1601 = vmatpush1.msra.mxu0 0.0
      %1602 = vmatprep.subr.mxu0 0.0
      %1603 = vmatpush1.msra.mxu0 0.0
      %1604 = vmatprep.subr.mxu0 0.0
      %1605 = vmatpush1.msra.mxu0 0.0
      %1606 = vmatprep.subr.mxu0 0.0
      %1607 = vmatpush1.msra.mxu0 0.0
      %1608 = vmatprep.subr.mxu0 0.0
      %1609 = vmatpush1.msra.mxu0 0.0
      %1610 = vmatprep.subr.mxu0 0.0
      %1611 = vmatpush1.msra.mxu0 0.0
      %1612 = vmatprep.subr.mxu0 0.0
      %1613 = vmatpush1.msra.mxu0 0.0
      %1614 = vmatprep.subr.mxu0 0.0
      %1615 = vmatpush1.msra.mxu0 0.0
      %1616 = vmatprep.subr.mxu0 0.0
      %1617 = vmatpush1.msra.mxu0 0.0
      %1618 = vmatprep.subr.mxu0 0.0
      %1619 = vmatpush1.msra.mxu0 0.0
      %1620 = vmatprep.subr.mxu0 0.0
      %1621 = vmatpush1.msra.mxu0 0.0
      %1622 = vmatprep.mubr.f32.mxu0 0.0
      %1623 = vmatmul.mubr.f32.gmra.mrb[0].mxu0 %v1556
      %v1624 = vpop.f32.mrb[0].mxu0
      %v1625 = vadd.f32 %v1553, %v1624
      %v1626 = vpop.f32.mrb[0].mxu0
      %1627 = vdwg.mxu0
      %v1628 = vmul.f32 %v1625, 0.5
      %v1629 = vmul.f32 %v1625, 0.0044715
      %v1630 = vmul.f32 %v1629, %v1625
      %v1631 = vmul.f32 %v1630, %v1625
      %v1632 = vadd.f32 %v1625, %v1631
      %v1633 = vmul.f32 %v1632, 0.7978846
      %v1634 = vtanh.pop %v1633
      %v1635 = vadd.f32 %v1634, 1.0
      %v1636 = vmul.f32 %v1628, %v1635
      %v1637 = vld [vmem:[%s13] sm:$0xff]
      %v1638 = vld [vmem:[%s13 + $0x8] sm:$0xff]
      %v1639 = vld [vmem:[%s13 + $0x10] sm:$0xff]
      %v1640 = vld [vmem:[%s13 + $0x18] sm:$0xff]
      %v1641 = vld [vmem:[%s13 + $0x20] sm:$0xff]
      %v1642 = vld [vmem:[%s13 + $0x28] sm:$0xff]
      %v1643 = vld [vmem:[%s13 + $0x30] sm:$0xff]
      %v1644 = vld [vmem:[%s13 + $0x38] sm:$0xff]
      %v1645 = vld [vmem:[%s14] sm:$0x1]
      %v1647 = vlaneseq
      %v1648 = vshrl.u32 %v1647, 7
      %v1649 = vsub.s32 0, %v1648
      %v1650 = vrot.slane %v1645, %v1649
      %vm1652 = vcmask 523264
      %v1654 = vsel %vm1652, %v1636, 0
      %1656 = vmatprep.subr.mxu0 0.0
      %1657 = vmatpush1.msra.mxu0 %v1637
      %1658 = vmatprep.subr.mxu0 0.0
      %1659 = vmatpush1.msra.mxu0 %v1638
      %1660 = vmatprep.subr.mxu0 0.0
      %1661 = vmatpush1.msra.mxu0 %v1639
      %1662 = vmatprep.subr.mxu0 0.0
      %1663 = vmatpush1.msra.mxu0 %v1640
      %1664 = vmatprep.subr.mxu0 0.0
      %1665 = vmatpush1.msra.mxu0 %v1641
      %1666 = vmatprep.subr.mxu0 0.0
      %1667 = vmatpush1.msra.mxu0 %v1642
      %1668 = vmatprep.subr.mxu0 0.0
      %1669 = vmatpush1.msra.mxu0 %v1643
      %1670 = vmatprep.subr.mxu0 0.0
      %1671 = vmatpush1.msra.mxu0 %v1644
      %1672 = vmatprep.subr.mxu0 0.0
      %1673 = vmatpush1.msra.mxu0 0.0
      %1674 = vmatprep.subr.mxu0 0.0
      %1675 = vmatpush1.msra.mxu0 0.0
      %1676 = vmatprep.subr.mxu0 0.0
      %1677 = vmatpush1.msra.mxu0 0.0
      %1678 = vmatprep.subr.mxu0 0.0
      %1679 = vmatpush1.msra.mxu0 0.0
      %1680 = vmatprep.subr.mxu0 0.0
      %1681 = vmatpush1.msra.mxu0 0.0
      %1682 = vmatprep.subr.mxu0 0.0
      %1683 = vmatpush1.msra.mxu0 0.0
      %1684 = vmatprep.subr.mxu0 0.0
      %1685 = vmatpush1.msra.mxu0 0.0
      %1686 = vmatprep.subr.mxu0 0.0
      %1687 = vmatpush1.msra.mxu0 0.0
      %1688 = vmatprep.subr.mxu0 0.0
      %1689 = vmatpush1.msra.mxu0 0.0
      %1690 = vmatprep.subr.mxu0 0.0
      %1691 = vmatpush1.msra.mxu0 0.0
      %1692 = vmatprep.subr.mxu0 0.0
      %1693 = vmatpush1.msra.mxu0 0.0
      %1694 = vmatprep.subr.mxu0 0.0
      %1695 = vmatpush1.msra.mxu0 0.0
      %1696 = vmatprep.subr.mxu0 0.0
      %1697 = vmatpush1.msra.mxu0 0.0
      %1698 = vmatprep.subr.mxu0 0.0
      %1699 = vmatpush1.msra.mxu0 0.0
      %1700 = vmatprep.subr.mxu0 0.0
      %1701 = vmatpush1.msra.mxu0 0.0
      %1702 = vmatprep.subr.mxu0 0.0
      %1703 = vmatpush1.msra.mxu0 0.0
      %1704 = vmatprep.subr.mxu0 0.0
      %1705 = vmatpush1.msra.mxu0 0.0
      %1706 = vmatprep.subr.mxu0 0.0
      %1707 = vmatpush1.msra.mxu0 0.0
      %1708 = vmatprep.subr.mxu0 0.0
      %1709 = vmatpush1.msra.mxu0 0.0
      %1710 = vmatprep.subr.mxu0 0.0
      %1711 = vmatpush1.msra.mxu0 0.0
      %1712 = vmatprep.subr.mxu0 0.0
      %1713 = vmatpush1.msra.mxu0 0.0
      %1714 = vmatprep.subr.mxu0 0.0
      %1715 = vmatpush1.msra.mxu0 0.0
      %1716 = vmatprep.subr.mxu0 0.0
      %1717 = vmatpush1.msra.mxu0 0.0
      %1718 = vmatprep.subr.mxu0 0.0
      %1719 = vmatpush1.msra.mxu0 0.0
      %1720 = vmatprep.mubr.f32.mxu0 0.0
      %1721 = vmatmul.mubr.f32.gmra.mrb[0].mxu0 %v1654
      %v1722 = vpop.f32.mrb[0].mxu0
      %v1723 = vadd.f32 %v1650, %v1722
      %v1724 = vpop.f32.mrb[0].mxu0
      %1725 = vdwg.mxu0
      %v1726 = vld [vmem:[%s15] sm:$0xff]
      %v1727 = vld [vmem:[%s16] sm:$0xff]
      %v1728 = vsel %vm590, %v1723, 0.0
      %1729 = vadd.xlane.f32.xlu0 %v1728
      %v1730 = vpop.xlane.xlu0 %1729
      %v1731 = vmul.f32 %v1730, %v1522
      %v1732 = vsub.f32 %v1723, %v1731
      %v1733 = vmul.f32 %v1732, %v1732
      %v1734 = vsel %vm590, %v1733, 0.0
      %1735 = vadd.xlane.f32.xlu0 %v1734
      %v1736 = vpop.xlane.xlu0 %1735
      %v1737 = vmul.f32 %v1736, %v1529
      %v1738 = vrsqrt.pop %v1737
      %v1739 = vmul.f32 %v1737, %v1738
      %vm1740 = vcmp.eq.f32.partialorder %v1737, inf
      %v1741 = vsel %vm1740, %v1737, %v1739
      %vm1742 = vcmp.eq.f32.partialorder %v1737, 0.0
      %v1743 = vand.u32 %v1737, 2147483648
      %v1744 = vsel %vm1742, %v1743, %v1741
      %v1745 = vadd.f32 %v1744, 1e-08
      %v1746 = vrcp.pop %v1745
      %v1747 = vmul.f32 %v1732, %v1746
      %v1748 = vmul.f32 %v1726, %v1747
      %v1749 = vadd.f32 %v1748, %v1727
      %v1750 = vadd.f32 %v1543, %v1749
      %1751 = vst.msk [vmem:[%s574] sm:$0xff] %vm590, %v1750
      %p1752 = scmp.lt.s32.totalorder %s28, 1
      %s1753 = scalar_select %p1752, %s28, 1
      %s1754 = smul.addr %s1753, 8
      %s1755 = scalar_lea.vmem %s17, %s1754
      // Predicated region
      $region89: #{transformer_forward.5} parent=87 // pred_check
        %p1756 = pneg %p418
      $region90: #{transformer_forward.5} parent=87 // pred_check_branch
        %1758 = sbr.rel (%p1756) target = $region92
      $region91: #{transformer_forward.5} parent=87 // pred_region
        _
      $region92: #{transformer_forward.5} parent=87 // pred_fallthru
        _
    $region88: #{transformer_forward.5} parent=5 // pred_fallthru
      _
    %p1759 = scmp.le.s32.totalorder 2, %s23
    // Predicated region
    $region93: #{transformer_forward.5} parent=5 // pred_check
      %p1760 = pneg %p1759
    $region94: #{transformer_forward.5} parent=5 // pred_check_branch
      %1762 = sbr.rel (%p1760) target = $region96
    $region95: #{transformer_forward.5} parent=5 // pred_region
      %s1763 = ssub.s32 %s23, 2
      // Predicated region
      $region97: #{transformer_forward.5} parent=95 // pred_check
        %p1764 = pneg %p424
      $region98: #{transformer_forward.5} parent=95 // pred_check_branch
        %1766 = sbr.rel (%p1764) target = $region100
      $region99: #{transformer_forward.5} parent=95 // pred_region
        %p1767 = scmp.lt.s32.totalorder %s29, 1
        %s1768 = scalar_select %p1767, %s29, 1
        %s1769 = smul.addr %s1768, 8
        %s1770 = scalar_lea.vmem %s17, %s1769
      $region100: #{transformer_forward.5} parent=95 // pred_fallthru
        _
    $region96: #{transformer_forward.5} parent=5 // pred_fallthru
      _
  $region6: #{transformer_forward.5} parent=0 // loop_footer
    %s27 = sadd.s32 1, %s23
  $region7: #{transformer_forward.5} parent=0 // loop_footer_branch
    %22 = sbr.rel target = $region3
  $region8: #{transformer_forward.5} parent=0 // loop_exit
    _

</llo_original>
